<compile_context>
chip_gen: v7x
topology: tpu7x:2x2x1
jax: 0.10.0
libtpu: 0.0.40
codegen_flags: <defaults>
</compile_context>

<pallas_src>
from functools import partial

import jax
import jax.numpy as jnp
import numpy as np
from jax.experimental import pallas as pl
from jax.experimental.pallas import tpu as pltpu


def attention_kernel(x_ref, wqkv_ref, bqkv_ref, wproj_ref, bproj_ref,
                     relb_ref, maskb_ref, o_ref, *, num_heads, head_dim,
                     compute_dtype):
    f32 = jnp.float32
    cd = compute_dtype
    # Exact reciprocal on the f32 parity path, fast EUP approximation otherwise.
    approx = jnp.dtype(cd) != jnp.dtype(jnp.float32)

    x = x_ref[0]                                           # (N, C) compute dtype
    C = x.shape[1]

    # Fused qkv projection: full-width (N,C)@(C,3C) MXU matmul with f32
    # accumulation.  The q-scale is already folded into wqkv / bqkv.
    qkv = jnp.dot(x, wqkv_ref[...], preferred_element_type=f32) + bqkv_ref[...]

    mask_bias = maskb_ref[0].astype(f32)                   # (1, N), broadcasts over rows

    ctx_heads = []
    for h in range(num_heads):                             # statically unrolled
        o = h * head_dim
        q = qkv[:, o:o + head_dim]                         # (N, hd) f32
        k = qkv[:, C + o:C + o + head_dim]                 # (N, hd) f32
        v = qkv[:, 2 * C + o:2 * C + o + head_dim]         # (N, hd) f32

        # attn = q @ k^T without materializing a transpose: contract head_dim
        # of both operands directly on the MXU.
        attn = jax.lax.dot_general(
            q.astype(cd), k.astype(cd),
            dimension_numbers=(((1,), (1,)), ((), ())),
            preferred_element_type=f32)                    # (N, N) f32
        # Relative-position bias + additive mask bias (0 or -1e30), added in f32.
        attn = attn + relb_ref[h].astype(f32) + mask_bias

        # Numerically-stable softmax in f32.  The normalization is deferred to
        # after the PV matmul: (N, hd) multiply instead of (N, N).
        m = jnp.max(attn, axis=-1, keepdims=True)
        e = jnp.exp(attn - m)
        s = jnp.sum(e, axis=-1, keepdims=True)
        ctx = jnp.dot(e.astype(cd), v.astype(cd),
                      preferred_element_type=f32)          # (N, hd) f32
        ctx = ctx * pl.reciprocal(s, approx=approx)
        ctx_heads.append(ctx.astype(cd))

    # Single full-width output projection: (N, C) @ (C, C) + bias.
    ctx_all = jnp.concatenate(ctx_heads, axis=-1)          # (N, C) compute dtype
    out = jnp.dot(ctx_all, wproj_ref[...], preferred_element_type=f32) + bproj_ref[...]
    o_ref[0] = out.astype(o_ref.dtype)


def _nbytes(shape, dtype):
    return int(np.prod(shape)) * jnp.dtype(dtype).itemsize


def attention_forward(x, w_qkv, q_bias, v_bias, w_proj, b_proj,
                      rel_bias=None, mask=None, *, num_heads,
                      compute_dtype=jnp.bfloat16, vmem_limit_bytes=None):
    """x: (B,N,C); w_qkv: (3C,C) torch layout; w_proj: (C,C) torch layout;
    rel_bias: (H,N,N); mask: (B,N) with 1 = keep."""
    B, N, C = x.shape
    H = num_heads
    hd = C // H
    scale = hd ** (-0.5)
    out_dtype = x.dtype

    if q_bias is None:
        q_bias = jnp.zeros((C,), jnp.float32)
    if v_bias is None:
        v_bias = jnp.zeros((C,), jnp.float32)
    if rel_bias is None:
        rel_bias = jnp.zeros((H, N, N), jnp.float32)
    if mask is None:
        mask = jnp.ones((B, N), jnp.int32)

    # torch Linear stores (out_features, in_features): y = x @ W.T.
    # Fuse the q scale into the q columns of the fused weight and bias.
    wqkv_f32 = w_qkv.T.astype(jnp.float32)                                    # (C, 3C)
    col_scale = jnp.concatenate([jnp.full((C,), scale, jnp.float32),
                                 jnp.ones((2 * C,), jnp.float32)])
    wqkv = (wqkv_f32 * col_scale[None, :]).astype(compute_dtype)              # (C, 3C)
    # torch.cat((q_bias, zeros_like(v_bias), v_bias)), with q part pre-scaled.
    bqkv = jnp.concatenate([q_bias.astype(jnp.float32) * scale,
                            jnp.zeros((C,), jnp.float32),
                            v_bias.astype(jnp.float32)])[None, :]             # (1, 3C) f32
    wproj = w_proj.T.astype(compute_dtype)                                    # (C, C)
    bproj = b_proj.astype(jnp.float32)[None, :]                               # (1, C) f32

    # On the bf16 path store the (large) rel_bias and the mask bias in bf16
    # (halves HBM traffic / VMEM); they are upcast to f32 at the logits add.
    # -1e30 is representable in bf16 (same exponent range as f32).
    bias_dtype = jnp.float32 if jnp.dtype(compute_dtype) == jnp.dtype(jnp.float32) \
        else jnp.bfloat16
    relb = rel_bias.astype(bias_dtype)                                        # (H, N, N)
    maskb = jnp.where(mask.astype(jnp.int32) != 0, 0.0,
                      -1e30).astype(bias_dtype)[:, None, :]                   # (B, 1, N)

    x_c = x.astype(compute_dtype)

    if vmem_limit_bytes is None:
        # Rough resident-VMEM budget: double-buffered blocks + f32 intermediates.
        est = (2 * _nbytes((N, C), compute_dtype)          # x block
               + 2 * _nbytes((N, C), out_dtype)            # out block
               + 2 * _nbytes((H, N, N), bias_dtype)        # rel-pos bias block
               + 2 * _nbytes((1, N), bias_dtype)           # mask bias block
               + 2 * (_nbytes((C, 3 * C), compute_dtype)   # weights
                      + _nbytes((C, C), compute_dtype)
                      + _nbytes((1, 4 * C), jnp.float32))
               + _nbytes((N, 3 * C), jnp.float32)          # qkv intermediate
               + 2 * _nbytes((N, N), jnp.float32)          # logits / exp intermediates
               + 2 * _nbytes((N, C), jnp.float32))         # ctx / proj intermediates
        vmem_limit_bytes = min(max(int(est * 3 // 2), 32 * 1024 * 1024),
                               100 * 1024 * 1024)

    kernel = partial(attention_kernel, num_heads=H, head_dim=hd,
                     compute_dtype=compute_dtype)

    # Weights, biases and rel_bias use constant index maps, so they are DMA'd
    # into VMEM once and stay resident across the whole (B,) grid.
    return pl.pallas_call(
        kernel,
        out_shape=jax.ShapeDtypeStruct((B, N, C), out_dtype),
        grid_spec=pltpu.PrefetchScalarGridSpec(
            num_scalar_prefetch=0,
            grid=(B,),
            in_specs=[
                pl.BlockSpec((1, N, C), lambda b: (b, 0, 0)),      # x per batch
                pl.BlockSpec((C, 3 * C), lambda b: (0, 0)),        # fused qkv weight
                pl.BlockSpec((1, 3 * C), lambda b: (0, 0)),        # fused qkv bias
                pl.BlockSpec((C, C), lambda b: (0, 0)),            # proj weight
                pl.BlockSpec((1, C), lambda b: (0, 0)),            # proj bias
                pl.BlockSpec((H, N, N), lambda b: (0, 0, 0)),      # rel-pos bias (resident)
                pl.BlockSpec((1, 1, N), lambda b: (b, 0, 0)),      # additive mask bias
            ],
            out_specs=pl.BlockSpec((1, N, C), lambda b: (b, 0, 0)),
        ),
        compiler_params=pltpu.CompilerParams(
            dimension_semantics=("parallel",),
            vmem_limit_bytes=vmem_limit_bytes,
        ),
    )(x_c, wqkv, bqkv, wproj, bproj, relb, maskb)


def attention_reference(x, w_qkv, q_bias, v_bias, w_proj, b_proj,
                        rel_bias, mask, *, num_heads):
    """Plain-JAX reference mirroring the PyTorch forward."""
    B, N, C = x.shape
    hd = C // num_heads
    scale = hd ** (-0.5)
    qkv_bias = jnp.concatenate([q_bias, jnp.zeros_like(v_bias), v_bias])
    qkv = x @ w_qkv.T + qkv_bias                                   # (B,N,3C)
    qkv = qkv.reshape(B, N, 3, num_heads, hd).transpose(2, 0, 3, 1, 4)
    q, k, v = qkv[0] * scale, qkv[1], qkv[2]                       # (B,H,N,hd)
    attn = jnp.einsum('bhqd,bhkd->bhqk', q.astype(jnp.float32),
                      k.astype(jnp.float32))
    attn = attn + rel_bias[None]
    attn = jnp.where(mask[:, None, None, :] != 0, attn, -jnp.inf)
    attn = jax.nn.softmax(attn, axis=-1).astype(x.dtype)
    out = jnp.einsum('bhqk,bhkd->bhqd', attn, v)
    out = out.transpose(0, 2, 1, 3).reshape(B, N, C)
    return out @ w_proj.T + b_proj


if __name__ == "__main__":
    B, N, C, H = 2, 8, 32, 4

    key = jax.random.PRNGKey(0)
    kx, kw1, kqb, kvb, kw2, kb2, krb = jax.random.split(key, 7)

    x = jax.random.normal(kx, (B, N, C), dtype=jnp.float32)
    w_qkv = jax.random.normal(kw1, (3 * C, C), dtype=jnp.float32) * 0.05
    q_bias = jax.random.normal(kqb, (C,), dtype=jnp.float32) * 0.02
    v_bias = jax.random.normal(kvb, (C,), dtype=jnp.float32) * 0.02
    w_proj = jax.random.normal(kw2, (C, C), dtype=jnp.float32) * 0.05
    b_proj = jax.random.normal(kb2, (C,), dtype=jnp.float32) * 0.02
    rel_bias = jax.random.normal(krb, (H, N, N), dtype=jnp.float32) * 0.1
    # mask: keep first 6 tokens of batch 0, all tokens of batch 1
    mask = jnp.array([[1] * 6 + [0] * 2, [1] * 8], dtype=jnp.int32)

    ref = attention_reference(x, w_qkv, q_bias, v_bias, w_proj, b_proj,
                              rel_bias, mask, num_heads=H)

    # f32-compute path (tight tolerance; exact reciprocal, f32 biases).
    out_f32 = attention_forward(x, w_qkv, q_bias, v_bias, w_proj, b_proj,
                                rel_bias, mask, num_heads=H,
                                compute_dtype=jnp.float32)
    out_f32 = jax.block_until_ready(out_f32)
    np.testing.assert_allclose(np.asarray(out_f32), np.asarray(ref),
                               rtol=5e-3, atol=5e-3)

    # Default bf16-operand / f32-accumulate path (bf16-level tolerance).
    out_bf16 = attention_forward(x, w_qkv, q_bias, v_bias, w_proj, b_proj,
                                 rel_bias, mask, num_heads=H)
    out_bf16 = jax.block_until_ready(out_bf16)
    np.testing.assert_allclose(np.asarray(out_bf16), np.asarray(ref),
                               rtol=2e-2, atol=2e-2)

    # TODO(synk): attn_drop / proj_drop (Dropout) are identity in eval mode and
    # are not implemented; attention-map saving / gradient hooks are
    # Python-side bookkeeping outside the forward math.
    print("KERNEL_OK")
</pallas_src>

<mosaic_0001>
module attributes {stable_mosaic.version = 11 : i64} {
  func.func @attention_kernel(%arg0: i32, %arg1: memref<1x8x32xf32, #tpu.memory_space<vmem>>, %arg2: memref<32x96xf32, #tpu.memory_space<vmem>>, %arg3: memref<1x96xf32, #tpu.memory_space<vmem>>, %arg4: memref<32x32xf32, #tpu.memory_space<vmem>>, %arg5: memref<1x32xf32, #tpu.memory_space<vmem>>, %arg6: memref<4x8x8xf32, #tpu.memory_space<vmem>>, %arg7: memref<1x1x8xf32, #tpu.memory_space<vmem>>, %arg8: memref<1x8x32xf32, #tpu.memory_space<vmem>>) attributes {dimension_semantics = [#tpu.dimension_semantics<parallel>], iteration_bounds = array<i64: 2>, scalar_prefetch = 0 : i64, scratch_operands = 0 : i64, tpu.core_type = #tpu.core_type<tc>, window_params = [{transform_indices = @transform_0, window_bounds = array<i64: 1, 8, 32>}, {pipeline_mode = #tpu.pipeline_mode<synchronous>, transform_indices = @transform_1, window_bounds = array<i64: 32, 96>}, {pipeline_mode = #tpu.pipeline_mode<synchronous>, transform_indices = @transform_2, window_bounds = array<i64: 1, 96>}, {pipeline_mode = #tpu.pipeline_mode<synchronous>, transform_indices = @transform_3, window_bounds = array<i64: 32, 32>}, {pipeline_mode = #tpu.pipeline_mode<synchronous>, transform_indices = @transform_4, window_bounds = array<i64: 1, 32>}, {pipeline_mode = #tpu.pipeline_mode<synchronous>, transform_indices = @transform_5, window_bounds = array<i64: 4, 8, 8>}, {transform_indices = @transform_6, window_bounds = array<i64: 1, 1, 8>}, {transform_indices = @transform_7, window_bounds = array<i64: 1, 8, 32>}]} {
    %c0 = arith.constant 0 : index
    %c0_0 = arith.constant 0 : index
    %c0_1 = arith.constant 0 : index
    %0 = vector.load %arg1[%c0, %c0_0, %c0_1] : memref<1x8x32xf32, #tpu.memory_space<vmem>>, vector<1x8x32xf32>
    %1 = vector.shape_cast %0 : vector<1x8x32xf32> to vector<8x32xf32>
    %c0_2 = arith.constant 0 : index
    %c0_3 = arith.constant 0 : index
    %2 = vector.load %arg2[%c0_2, %c0_3] : memref<32x96xf32, #tpu.memory_space<vmem>>, vector<32x96xf32>
    %cst = arith.constant dense<0.000000e+00> : vector<8x96xf32>
    %3 = tpu.matmul %1, %2, %cst {dimension_numbers = #tpu.dot_dimension_numbers<[1], [0], [0], [1], [0, 0, 1, 1], [], []>} : vector<8x32xf32>, vector<32x96xf32>, vector<8x96xf32> -> vector<8x96xf32>
    %c0_4 = arith.constant 0 : index
    %c0_5 = arith.constant 0 : index
    %4 = vector.load %arg3[%c0_4, %c0_5] : memref<1x96xf32, #tpu.memory_space<vmem>>, vector<1x96xf32>
    %5 = vector.broadcast %4 : vector<1x96xf32> to vector<8x96xf32>
    %6 = arith.addf %3, %5 : vector<8x96xf32>
    %c0_6 = arith.constant 0 : index
    %c0_7 = arith.constant 0 : index
    %c0_8 = arith.constant 0 : index
    %7 = vector.load %arg7[%c0_6, %c0_7, %c0_8] : memref<1x1x8xf32, #tpu.memory_space<vmem>>, vector<1x1x8xf32>
    %8 = vector.shape_cast %7 : vector<1x1x8xf32> to vector<1x8xf32>
    %9 = vector.extract_strided_slice %6 {offsets = [0, 0], sizes = [8, 8], strides = [1, 1]} : vector<8x96xf32> to vector<8x8xf32>
    %10 = vector.extract_strided_slice %6 {offsets = [0, 32], sizes = [8, 8], strides = [1, 1]} : vector<8x96xf32> to vector<8x8xf32>
    %11 = vector.extract_strided_slice %6 {offsets = [0, 64], sizes = [8, 8], strides = [1, 1]} : vector<8x96xf32> to vector<8x8xf32>
    %cst_9 = arith.constant dense<0.000000e+00> : vector<8x8xf32>
    %12 = tpu.matmul %9, %10, %cst_9 {dimension_numbers = #tpu.dot_dimension_numbers<[1], [1], [0], [0], [0, 0, 1, 0], [], []>} : vector<8x8xf32>, vector<8x8xf32>, vector<8x8xf32> -> vector<8x8xf32>
    %c0_10 = arith.constant 0 : index
    %c0_11 = arith.constant 0 : index
    %c0_12 = arith.constant 0 : index
    %13 = vector.load %arg6[%c0_10, %c0_11, %c0_12] : memref<4x8x8xf32, #tpu.memory_space<vmem>>, vector<1x8x8xf32>
    %14 = vector.shape_cast %13 : vector<1x8x8xf32> to vector<8x8xf32>
    %15 = arith.addf %12, %14 : vector<8x8xf32>
    %16 = vector.broadcast %8 : vector<1x8xf32> to vector<8x8xf32>
    %17 = arith.addf %15, %16 : vector<8x8xf32>
    %cst_13 = arith.constant dense<0xFF800000> : vector<8xf32>
    %18 = vector.multi_reduction <maximumf>, %17, %cst_13 [1] : vector<8x8xf32> to vector<8xf32>
    %19 = vector.shape_cast %18 : vector<8xf32> to vector<8x1xf32>
    %20 = vector.broadcast %19 : vector<8x1xf32> to vector<8x8xf32>
    %21 = arith.subf %17, %20 : vector<8x8xf32>
    %22 = math.exp %21 : vector<8x8xf32>
    %cst_14 = arith.constant dense<0.000000e+00> : vector<8xf32>
    %23 = vector.multi_reduction <add>, %22, %cst_14 [1] : vector<8x8xf32> to vector<8xf32>
    %24 = vector.shape_cast %23 : vector<8xf32> to vector<8x1xf32>
    %cst_15 = arith.constant dense<0.000000e+00> : vector<8x8xf32>
    %25 = tpu.matmul %22, %11, %cst_15 {dimension_numbers = #tpu.dot_dimension_numbers<[1], [0], [0], [1], [0, 0, 1, 1], [], []>} : vector<8x8xf32>, vector<8x8xf32>, vector<8x8xf32> -> vector<8x8xf32>
    %26 = tpu.reciprocal %24 : vector<8x1xf32> -> vector<8x1xf32>
    %27 = vector.broadcast %26 : vector<8x1xf32> to vector<8x8xf32>
    %28 = arith.mulf %25, %27 : vector<8x8xf32>
    %29 = vector.extract_strided_slice %6 {offsets = [0, 8], sizes = [8, 8], strides = [1, 1]} : vector<8x96xf32> to vector<8x8xf32>
    %30 = vector.extract_strided_slice %6 {offsets = [0, 40], sizes = [8, 8], strides = [1, 1]} : vector<8x96xf32> to vector<8x8xf32>
    %31 = vector.extract_strided_slice %6 {offsets = [0, 72], sizes = [8, 8], strides = [1, 1]} : vector<8x96xf32> to vector<8x8xf32>
    %cst_16 = arith.constant dense<0.000000e+00> : vector<8x8xf32>
    %32 = tpu.matmul %29, %30, %cst_16 {dimension_numbers = #tpu.dot_dimension_numbers<[1], [1], [0], [0], [0, 0, 1, 0], [], []>} : vector<8x8xf32>, vector<8x8xf32>, vector<8x8xf32> -> vector<8x8xf32>
    %c1 = arith.constant 1 : index
    %c0_17 = arith.constant 0 : index
    %c0_18 = arith.constant 0 : index
    %33 = vector.load %arg6[%c1, %c0_17, %c0_18] : memref<4x8x8xf32, #tpu.memory_space<vmem>>, vector<1x8x8xf32>
    %34 = vector.shape_cast %33 : vector<1x8x8xf32> to vector<8x8xf32>
    %35 = arith.addf %32, %34 : vector<8x8xf32>
    %36 = vector.broadcast %8 : vector<1x8xf32> to vector<8x8xf32>
    %37 = arith.addf %35, %36 : vector<8x8xf32>
    %cst_19 = arith.constant dense<0xFF800000> : vector<8xf32>
    %38 = vector.multi_reduction <maximumf>, %37, %cst_19 [1] : vector<8x8xf32> to vector<8xf32>
    %39 = vector.shape_cast %38 : vector<8xf32> to vector<8x1xf32>
    %40 = vector.broadcast %39 : vector<8x1xf32> to vector<8x8xf32>
    %41 = arith.subf %37, %40 : vector<8x8xf32>
    %42 = math.exp %41 : vector<8x8xf32>
    %cst_20 = arith.constant dense<0.000000e+00> : vector<8xf32>
    %43 = vector.multi_reduction <add>, %42, %cst_20 [1] : vector<8x8xf32> to vector<8xf32>
    %44 = vector.shape_cast %43 : vector<8xf32> to vector<8x1xf32>
    %cst_21 = arith.constant dense<0.000000e+00> : vector<8x8xf32>
    %45 = tpu.matmul %42, %31, %cst_21 {dimension_numbers = #tpu.dot_dimension_numbers<[1], [0], [0], [1], [0, 0, 1, 1], [], []>} : vector<8x8xf32>, vector<8x8xf32>, vector<8x8xf32> -> vector<8x8xf32>
    %46 = tpu.reciprocal %44 : vector<8x1xf32> -> vector<8x1xf32>
    %47 = vector.broadcast %46 : vector<8x1xf32> to vector<8x8xf32>
    %48 = arith.mulf %45, %47 : vector<8x8xf32>
    %49 = vector.extract_strided_slice %6 {offsets = [0, 16], sizes = [8, 8], strides = [1, 1]} : vector<8x96xf32> to vector<8x8xf32>
    %50 = vector.extract_strided_slice %6 {offsets = [0, 48], sizes = [8, 8], strides = [1, 1]} : vector<8x96xf32> to vector<8x8xf32>
    %51 = vector.extract_strided_slice %6 {offsets = [0, 80], sizes = [8, 8], strides = [1, 1]} : vector<8x96xf32> to vector<8x8xf32>
    %cst_22 = arith.constant dense<0.000000e+00> : vector<8x8xf32>
    %52 = tpu.matmul %49, %50, %cst_22 {dimension_numbers = #tpu.dot_dimension_numbers<[1], [1], [0], [0], [0, 0, 1, 0], [], []>} : vector<8x8xf32>, vector<8x8xf32>, vector<8x8xf32> -> vector<8x8xf32>
    %c2 = arith.constant 2 : index
    %c0_23 = arith.constant 0 : index
    %c0_24 = arith.constant 0 : index
    %53 = vector.load %arg6[%c2, %c0_23, %c0_24] : memref<4x8x8xf32, #tpu.memory_space<vmem>>, vector<1x8x8xf32>
    %54 = vector.shape_cast %53 : vector<1x8x8xf32> to vector<8x8xf32>
    %55 = arith.addf %52, %54 : vector<8x8xf32>
    %56 = vector.broadcast %8 : vector<1x8xf32> to vector<8x8xf32>
    %57 = arith.addf %55, %56 : vector<8x8xf32>
    %cst_25 = arith.constant dense<0xFF800000> : vector<8xf32>
    %58 = vector.multi_reduction <maximumf>, %57, %cst_25 [1] : vector<8x8xf32> to vector<8xf32>
    %59 = vector.shape_cast %58 : vector<8xf32> to vector<8x1xf32>
    %60 = vector.broadcast %59 : vector<8x1xf32> to vector<8x8xf32>
    %61 = arith.subf %57, %60 : vector<8x8xf32>
    %62 = math.exp %61 : vector<8x8xf32>
    %cst_26 = arith.constant dense<0.000000e+00> : vector<8xf32>
    %63 = vector.multi_reduction <add>, %62, %cst_26 [1] : vector<8x8xf32> to vector<8xf32>
    %64 = vector.shape_cast %63 : vector<8xf32> to vector<8x1xf32>
    %cst_27 = arith.constant dense<0.000000e+00> : vector<8x8xf32>
    %65 = tpu.matmul %62, %51, %cst_27 {dimension_numbers = #tpu.dot_dimension_numbers<[1], [0], [0], [1], [0, 0, 1, 1], [], []>} : vector<8x8xf32>, vector<8x8xf32>, vector<8x8xf32> -> vector<8x8xf32>
    %66 = tpu.reciprocal %64 : vector<8x1xf32> -> vector<8x1xf32>
    %67 = vector.broadcast %66 : vector<8x1xf32> to vector<8x8xf32>
    %68 = arith.mulf %65, %67 : vector<8x8xf32>
    %69 = vector.extract_strided_slice %6 {offsets = [0, 24], sizes = [8, 8], strides = [1, 1]} : vector<8x96xf32> to vector<8x8xf32>
    %70 = vector.extract_strided_slice %6 {offsets = [0, 56], sizes = [8, 8], strides = [1, 1]} : vector<8x96xf32> to vector<8x8xf32>
    %71 = vector.extract_strided_slice %6 {offsets = [0, 88], sizes = [8, 8], strides = [1, 1]} : vector<8x96xf32> to vector<8x8xf32>
    %cst_28 = arith.constant dense<0.000000e+00> : vector<8x8xf32>
    %72 = tpu.matmul %69, %70, %cst_28 {dimension_numbers = #tpu.dot_dimension_numbers<[1], [1], [0], [0], [0, 0, 1, 0], [], []>} : vector<8x8xf32>, vector<8x8xf32>, vector<8x8xf32> -> vector<8x8xf32>
    %c3 = arith.constant 3 : index
    %c0_29 = arith.constant 0 : index
    %c0_30 = arith.constant 0 : index
    %73 = vector.load %arg6[%c3, %c0_29, %c0_30] : memref<4x8x8xf32, #tpu.memory_space<vmem>>, vector<1x8x8xf32>
    %74 = vector.shape_cast %73 : vector<1x8x8xf32> to vector<8x8xf32>
    %75 = arith.addf %72, %74 : vector<8x8xf32>
    %76 = vector.broadcast %8 : vector<1x8xf32> to vector<8x8xf32>
    %77 = arith.addf %75, %76 : vector<8x8xf32>
    %cst_31 = arith.constant dense<0xFF800000> : vector<8xf32>
    %78 = vector.multi_reduction <maximumf>, %77, %cst_31 [1] : vector<8x8xf32> to vector<8xf32>
    %79 = vector.shape_cast %78 : vector<8xf32> to vector<8x1xf32>
    %80 = vector.broadcast %79 : vector<8x1xf32> to vector<8x8xf32>
    %81 = arith.subf %77, %80 : vector<8x8xf32>
    %82 = math.exp %81 : vector<8x8xf32>
    %cst_32 = arith.constant dense<0.000000e+00> : vector<8xf32>
    %83 = vector.multi_reduction <add>, %82, %cst_32 [1] : vector<8x8xf32> to vector<8xf32>
    %84 = vector.shape_cast %83 : vector<8xf32> to vector<8x1xf32>
    %cst_33 = arith.constant dense<0.000000e+00> : vector<8x8xf32>
    %85 = tpu.matmul %82, %71, %cst_33 {dimension_numbers = #tpu.dot_dimension_numbers<[1], [0], [0], [1], [0, 0, 1, 1], [], []>} : vector<8x8xf32>, vector<8x8xf32>, vector<8x8xf32> -> vector<8x8xf32>
    %86 = tpu.reciprocal %84 : vector<8x1xf32> -> vector<8x1xf32>
    %87 = vector.broadcast %86 : vector<8x1xf32> to vector<8x8xf32>
    %88 = arith.mulf %85, %87 : vector<8x8xf32>
    %89 = tpu.concatenate %28, %48, %68, %88 in 1 : vector<8x8xf32>, vector<8x8xf32>, vector<8x8xf32>, vector<8x8xf32> -> vector<8x32xf32>
    %c0_34 = arith.constant 0 : index
    %c0_35 = arith.constant 0 : index
    %90 = vector.load %arg4[%c0_34, %c0_35] : memref<32x32xf32, #tpu.memory_space<vmem>>, vector<32x32xf32>
    %cst_36 = arith.constant dense<0.000000e+00> : vector<8x32xf32>
    %91 = tpu.matmul %89, %90, %cst_36 {dimension_numbers = #tpu.dot_dimension_numbers<[1], [0], [0], [1], [0, 0, 1, 1], [], []>} : vector<8x32xf32>, vector<32x32xf32>, vector<8x32xf32> -> vector<8x32xf32>
    %c0_37 = arith.constant 0 : index
    %c0_38 = arith.constant 0 : index
    %92 = vector.load %arg5[%c0_37, %c0_38] : memref<1x32xf32, #tpu.memory_space<vmem>>, vector<1x32xf32>
    %93 = vector.broadcast %92 : vector<1x32xf32> to vector<8x32xf32>
    %94 = arith.addf %91, %93 : vector<8x32xf32>
    %c0_39 = arith.constant 0 : index
    %c0_40 = arith.constant 0 : index
    %c0_41 = arith.constant 0 : index
    %95 = vector.load %arg8[%c0_39, %c0_40, %c0_41] : memref<1x8x32xf32, #tpu.memory_space<vmem>>, vector<1x8x32xf32>
    %96 = vector.shape_cast %95 : vector<1x8x32xf32> to vector<8x32xf32>
    %97 = vector.shape_cast %94 : vector<8x32xf32> to vector<1x8x32xf32>
    tpu.vector_store %arg8[%c0_39, %c0_40, %c0_41], %97 {strides = array<i32>} : memref<1x8x32xf32, #tpu.memory_space<vmem>>, vector<1x8x32xf32>,
    return
  }
  func.func @transform_0(%arg0: i32) -> (i32, i32, i32) {
    %c0_i32 = arith.constant 0 : i32
    %c0_i32_0 = arith.constant 0 : i32
    %c0_i32_1 = arith.constant 0 : i32
    return %arg0, %c0_i32, %c0_i32_0 : i32, i32, i32
  }
  func.func @transform_1(%arg0: i32) -> (i32, i32) {
    %c0_i32 = arith.constant 0 : i32
    %c0_i32_0 = arith.constant 0 : i32
    %c0_i32_1 = arith.constant 0 : i32
    return %c0_i32, %c0_i32_0 : i32, i32
  }
  func.func @transform_2(%arg0: i32) -> (i32, i32) {
    %c0_i32 = arith.constant 0 : i32
    %c0_i32_0 = arith.constant 0 : i32
    %c0_i32_1 = arith.constant 0 : i32
    return %c0_i32, %c0_i32_0 : i32, i32
  }
  func.func @transform_3(%arg0: i32) -> (i32, i32) {
    %c0_i32 = arith.constant 0 : i32
    %c0_i32_0 = arith.constant 0 : i32
    %c0_i32_1 = arith.constant 0 : i32
    return %c0_i32, %c0_i32_0 : i32, i32
  }
  func.func @transform_4(%arg0: i32) -> (i32, i32) {
    %c0_i32 = arith.constant 0 : i32
    %c0_i32_0 = arith.constant 0 : i32
    %c0_i32_1 = arith.constant 0 : i32
    return %c0_i32, %c0_i32_0 : i32, i32
  }
  func.func @transform_5(%arg0: i32) -> (i32, i32, i32) {
    %c0_i32 = arith.constant 0 : i32
    %c0_i32_0 = arith.constant 0 : i32
    %c0_i32_1 = arith.constant 0 : i32
    %c0_i32_2 = arith.constant 0 : i32
    return %c0_i32, %c0_i32_0, %c0_i32_1 : i32, i32, i32
  }
  func.func @transform_6(%arg0: i32) -> (i32, i32, i32) {
    %c0_i32 = arith.constant 0 : i32
    %c0_i32_0 = arith.constant 0 : i32
    %c0_i32_1 = arith.constant 0 : i32
    return %arg0, %c0_i32, %c0_i32_0 : i32, i32, i32
  }
  func.func @transform_7(%arg0: i32) -> (i32, i32, i32) {
    %c0_i32 = arith.constant 0 : i32
    %c0_i32_0 = arith.constant 0 : i32
    %c0_i32_1 = arith.constant 0 : i32
    return %arg0, %c0_i32, %c0_i32_0 : i32, i32, i32
  }
}

</mosaic_0001>

<llo_original>
// kernel: tpu_custom_call.1
$region0: #{tpu_custom_call.1}
  #allocation0 [shape = 'u32[]', space=smem, size = 0x4, offset = 0x4, fixed_abs, tag = 'smem constant byte address 0x4 - core index']
  #allocation1 [shape = 'u32[144,128]{1,0:T(1,128)}', space=vmem, size = 0x12000, scoped, tag = 'internal scratch']
  %s0 = inlined_call_operand.hbm [shape: f32[2,8,32], index: 0, kind: input, shape index: {}]
  %s1 = inlined_call_operand.hbm [shape: f32[32,96], index: 1, kind: input, shape index: {}]
  %s2 = inlined_call_operand.vmem [shape: f32[1,96], index: 2, kind: input, shape index: {}]
  %s3 = inlined_call_operand.hbm [shape: f32[32,32], index: 3, kind: input, shape index: {}]
  %s4 = inlined_call_operand.vmem [shape: f32[1,32], index: 4, kind: input, shape index: {}]
  %s5 = inlined_call_operand.hbm [shape: f32[4,8,8], index: 5, kind: input, shape index: {}]
  %s6 = inlined_call_operand.vmem [shape: f32[2,1,8], index: 6, kind: input, shape index: {}]
  %s7 = inlined_call_operand.hbm [shape: f32[2,8,32], index: 7, kind: output, shape index: {}]
  %s8 = sld [smem:[#allocation0]]
  $region77: #{tpu_custom_call.1} parent=0
    _
  %s10 = ssub.s32 1, %s8
  %s11 = scalar_select 0, %s10, %s8
  $region1: #{tpu_custom_call.1} parent=0
    #allocation2 [shape = 'u8[8192]{0}', space=vmem, size = 0x2000, scoped, tag = 'input window, operand 0']
    #allocation3 [shape = 's32[2]{0}', space=sflag, size = 0x8, scoped, tag = 'scoped memory for tpu_custom_call.1']
    #allocation4 [shape = 's32[2]{0}', space=sflag, size = 0x8, scoped, tag = 'scoped memory for tpu_custom_call.1']
    #allocation5 [shape = 'u8[16384]{0}', space=vmem, size = 0x4000, scoped, tag = 'input window, operand 1, single buffered']
    #allocation6 [shape = 's32[1]{0}', space=sflag, size = 0x4, scoped, tag = 'scoped memory for tpu_custom_call.1']
    #allocation7 [shape = 'u8[16384]{0}', space=vmem, size = 0x4000, scoped, tag = 'input window, operand 3, single buffered']
    #allocation8 [shape = 'u8[16384]{0}', space=vmem, size = 0x4000, scoped, tag = 'input window, operand 5, single buffered']
    #allocation9 [shape = 's32[1]{0}', space=sflag, size = 0x4, scoped, tag = 'scoped memory for tpu_custom_call.1']
    #allocation10 [shape = 'u8[8192]{0}', space=vmem, size = 0x2000, scoped, tag = 'output window, operand 0']
    %12 = vsyncpa [#allocation3], 0
    %s13 = scalar_lea.sflag [#allocation3], 1
    %14 = vsyncpa %s13, 0
    %15 = vsyncpa [#allocation6], 0
    %16 = vsyncpa [#allocation9], 0
    %17 = vsyncpa [#allocation4], 0
    %s18 = scalar_lea.sflag [#allocation4], 1
    %19 = vsyncpa %s18, 0
    loop: start=0, step=1, limit=4
    $region2: #{tpu_custom_call.1} parent=1 // loop_pre_header
      _
    $region3: #{tpu_custom_call.1} parent=1 // loop_header
      %s21 = sphi 0, %s25
      %p22 = scmp.ge.s32.totalorder %s21, 4
      %s31 = sphi 0, %s33
      %s34 = sphi 0, %s31
      %s35 = sphi 0, %s34
      %s51 = sphi 0, %s35
      %s55 = sphi 0, %s55
      %s57 = sphi 0, %s55
      %s58 = sphi 0, %s57
      %s72 = sphi 0, %s58
      %s76 = sphi 0, %s76
      %s78 = sphi 0, %s76
      %s79 = sphi 0, %s78
      %s93 = sphi 0, %s79
      %s97 = sphi 0, %s97
      %s99 = sphi 0, %s97
      %s100 = sphi 0, %s99
      %s114 = sphi 0, %s100
      %s118 = sphi 0, %s118
      %s120 = sphi 0, %s118
      %s121 = sphi 0, %s120
      %s135 = sphi 0, %s121
      %s139 = sphi 0, %s139
      %s141 = sphi 0, %s139
      %s142 = sphi 0, %s141
      %s156 = sphi 0, %s142
      %s162 = sphi 0, %s164
      %s165 = sphi 0, %s162
      %s166 = sphi 0, %s165
      %s182 = sphi 0, %s166
      %s188 = sphi 0, %s190
      %s191 = sphi 0, %s188
      %s192 = sphi 0, %s191
      %s208 = sphi 0, %s192
    $region4: #{tpu_custom_call.1} parent=1 // loop_header_branch
      %24 = sbr.rel (%p22) target = $region8
    $region5: #{tpu_custom_call.1} parent=1 // loop_body
      %s26 = ssub.s32 %s21, 1
      %s27 = ssub.s32 %s21, 2
      %s28 = sadd.s32 %s21, 1
      %s29 = ssub.s32 %s21, %s28
      %p30 = scmp.eq.s32.totalorder %s29, 0
      %s32 = sadd.s32 %s31, 1
      %s33 = scalar_select %p30, %s31, %s32
      %p36 = pneg %p30
      %p37 = scmp.eq.s32.totalorder %s21, 1
      %p38 = por %p36, %p37
      %p39 = scmp.ne.s32.totalorder %s31, %s34
      %p40 = scmp.eq.s32.totalorder %s21, 0
      %p41 = por %p39, %p40
      %p42 = scmp.ne.s32.totalorder %s31, %s34
      %p43 = scmp.eq.s32.totalorder %s26, 1
      %p44 = por %p42, %p43
      %p45 = scmp.ne.s32.totalorder %s34, %s35
      %p46 = scmp.eq.s32.totalorder %s26, 0
      %p47 = por %p45, %p46
      %p48 = scmp.ne.s32.totalorder %s34, %s35
      %p49 = scmp.eq.s32.totalorder %s27, 1
      %p50 = por %p48, %p49
      %p52 = scmp.ne.s32.totalorder %s35, %s51
      %p53 = scmp.eq.s32.totalorder %s27, 0
      %p54 = por %p52, %p53
      %s56 = sadd.s32 %s55, 1
      %p59 = scmp.eq.s32.totalorder %s21, 1
      %p60 = scmp.ne.s32.totalorder %s55, %s57
      %p61 = scmp.eq.s32.totalorder %s21, 0
      %p62 = por %p60, %p61
      %p63 = scmp.ne.s32.totalorder %s55, %s57
      %p64 = scmp.eq.s32.totalorder %s26, 1
      %p65 = por %p63, %p64
      %p66 = scmp.ne.s32.totalorder %s57, %s58
      %p67 = scmp.eq.s32.totalorder %s26, 0
      %p68 = por %p66, %p67
      %p69 = scmp.ne.s32.totalorder %s57, %s58
      %p70 = scmp.eq.s32.totalorder %s27, 1
      %p71 = por %p69, %p70
      %p73 = scmp.ne.s32.totalorder %s58, %s72
      %p74 = scmp.eq.s32.totalorder %s27, 0
      %p75 = por %p73, %p74
      %s77 = sadd.s32 %s76, 1
      %p80 = scmp.eq.s32.totalorder %s21, 1
      %p81 = scmp.ne.s32.totalorder %s76, %s78
      %p82 = scmp.eq.s32.totalorder %s21, 0
      %p83 = por %p81, %p82
      %p84 = scmp.ne.s32.totalorder %s76, %s78
      %p85 = scmp.eq.s32.totalorder %s26, 1
      %p86 = por %p84, %p85
      %p87 = scmp.ne.s32.totalorder %s78, %s79
      %p88 = scmp.eq.s32.totalorder %s26, 0
      %p89 = por %p87, %p88
      %p90 = scmp.ne.s32.totalorder %s78, %s79
      %p91 = scmp.eq.s32.totalorder %s27, 1
      %p92 = por %p90, %p91
      %p94 = scmp.ne.s32.totalorder %s79, %s93
      %p95 = scmp.eq.s32.totalorder %s27, 0
      %p96 = por %p94, %p95
      %s98 = sadd.s32 %s97, 1
      %p101 = scmp.eq.s32.totalorder %s21, 1
      %p102 = scmp.ne.s32.totalorder %s97, %s99
      %p103 = scmp.eq.s32.totalorder %s21, 0
      %p104 = por %p102, %p103
      %p105 = scmp.ne.s32.totalorder %s97, %s99
      %p106 = scmp.eq.s32.totalorder %s26, 1
      %p107 = por %p105, %p106
      %p108 = scmp.ne.s32.totalorder %s99, %s100
      %p109 = scmp.eq.s32.totalorder %s26, 0
      %p110 = por %p108, %p109
      %p111 = scmp.ne.s32.totalorder %s99, %s100
      %p112 = scmp.eq.s32.totalorder %s27, 1
      %p113 = por %p111, %p112
      %p115 = scmp.ne.s32.totalorder %s100, %s114
      %p116 = scmp.eq.s32.totalorder %s27, 0
      %p117 = por %p115, %p116
      %s119 = sadd.s32 %s118, 1
      %p122 = scmp.eq.s32.totalorder %s21, 1
      %p123 = scmp.ne.s32.totalorder %s118, %s120
      %p124 = scmp.eq.s32.totalorder %s21, 0
      %p125 = por %p123, %p124
      %p126 = scmp.ne.s32.totalorder %s118, %s120
      %p127 = scmp.eq.s32.totalorder %s26, 1
      %p128 = por %p126, %p127
      %p129 = scmp.ne.s32.totalorder %s120, %s121
      %p130 = scmp.eq.s32.totalorder %s26, 0
      %p131 = por %p129, %p130
      %p132 = scmp.ne.s32.totalorder %s120, %s121
      %p133 = scmp.eq.s32.totalorder %s27, 1
      %p134 = por %p132, %p133
      %p136 = scmp.ne.s32.totalorder %s121, %s135
      %p137 = scmp.eq.s32.totalorder %s27, 0
      %p138 = por %p136, %p137
      %s140 = sadd.s32 %s139, 1
      %p143 = scmp.eq.s32.totalorder %s21, 1
      %p144 = scmp.ne.s32.totalorder %s139, %s141
      %p145 = scmp.eq.s32.totalorder %s21, 0
      %p146 = por %p144, %p145
      %p147 = scmp.ne.s32.totalorder %s139, %s141
      %p148 = scmp.eq.s32.totalorder %s26, 1
      %p149 = por %p147, %p148
      %p150 = scmp.ne.s32.totalorder %s141, %s142
      %p151 = scmp.eq.s32.totalorder %s26, 0
      %p152 = por %p150, %p151
      %p153 = scmp.ne.s32.totalorder %s141, %s142
      %p154 = scmp.eq.s32.totalorder %s27, 1
      %p155 = por %p153, %p154
      %p157 = scmp.ne.s32.totalorder %s142, %s156
      %p158 = scmp.eq.s32.totalorder %s27, 0
      %p159 = por %p157, %p158
      %s160 = ssub.s32 %s21, %s28
      %p161 = scmp.eq.s32.totalorder %s160, 0
      %s163 = sadd.s32 %s162, 1
      %s164 = scalar_select %p161, %s162, %s163
      %p167 = pneg %p161
      %p168 = scmp.eq.s32.totalorder %s21, 1
      %p169 = por %p167, %p168
      %p170 = scmp.ne.s32.totalorder %s162, %s165
      %p171 = scmp.eq.s32.totalorder %s21, 0
      %p172 = por %p170, %p171
      %p173 = scmp.ne.s32.totalorder %s162, %s165
      %p174 = scmp.eq.s32.totalorder %s26, 1
      %p175 = por %p173, %p174
      %p176 = scmp.ne.s32.totalorder %s165, %s166
      %p177 = scmp.eq.s32.totalorder %s26, 0
      %p178 = por %p176, %p177
      %p179 = scmp.ne.s32.totalorder %s165, %s166
      %p180 = scmp.eq.s32.totalorder %s27, 1
      %p181 = por %p179, %p180
      %p183 = scmp.ne.s32.totalorder %s166, %s182
      %p184 = scmp.eq.s32.totalorder %s27, 0
      %p185 = por %p183, %p184
      %s186 = ssub.s32 %s21, %s28
      %p187 = scmp.eq.s32.totalorder %s186, 0
      %s189 = sadd.s32 %s188, 1
      %s190 = scalar_select %p187, %s188, %s189
      %p193 = pneg %p187
      %p194 = scmp.eq.s32.totalorder %s21, 1
      %p195 = por %p193, %p194
      %p196 = scmp.ne.s32.totalorder %s188, %s191
      %p197 = scmp.eq.s32.totalorder %s21, 0
      %p198 = por %p196, %p197
      %p199 = scmp.ne.s32.totalorder %s188, %s191
      %p200 = scmp.eq.s32.totalorder %s26, 1
      %p201 = por %p199, %p200
      %p202 = scmp.ne.s32.totalorder %s191, %s192
      %p203 = scmp.eq.s32.totalorder %s26, 0
      %p204 = por %p202, %p203
      %p205 = scmp.ne.s32.totalorder %s191, %s192
      %p206 = scmp.eq.s32.totalorder %s27, 1
      %p207 = por %p205, %p206
      %p209 = scmp.ne.s32.totalorder %s192, %s208
      %p210 = scmp.eq.s32.totalorder %s27, 0
      %p211 = por %p209, %p210
      %p212 = scmp.le.s32.totalorder 1, %s21
      %p213 = scmp.lt.s32.totalorder %s21, 3
      %p214 = pnand %p212, %p213
      %p215 = pneg %p214
      // Predicated region
      $region9: #{tpu_custom_call.1} parent=5 // pred_check
        _
      $region10: #{tpu_custom_call.1} parent=5 // pred_check_branch
        %217 = sbr.rel (%p214) target = $region12
      $region11: #{tpu_custom_call.1} parent=5 // pred_region
        %s218 = ssub.s32 %s21, 1
        // Predicated region
        $region13: #{tpu_custom_call.1} parent=11 // pred_check
          %p219 = pneg %p68
        $region14: #{tpu_custom_call.1} parent=11 // pred_check_branch
          %221 = sbr.rel (%p219) target = $region16
        $region15: #{tpu_custom_call.1} parent=11 // pred_region
          %s223 = ssub.s32 512, 512
          %224 = vsyncadd [#allocation6], %s223
          %s225 = sshll.u32 [#allocation5], 4
          %s226 = int_to_ptr.vmem [resolvable:$true] %s225
          %231 = dma.hbm_to_vmem [thread:$0]  %s1, 512, %s226, [#allocation6], 128, 128, 8
        $region16: #{tpu_custom_call.1} parent=11 // pred_fallthru
          _
        // Predicated region
        $region17: #{tpu_custom_call.1} parent=11 // pred_check
          %p232 = pneg %p89
        $region18: #{tpu_custom_call.1} parent=11 // pred_check_branch
          %234 = sbr.rel (%p232) target = $region20
        $region19: #{tpu_custom_call.1} parent=11 // pred_region
          _
        $region20: #{tpu_custom_call.1} parent=11 // pred_fallthru
          _
        // Predicated region
        $region21: #{tpu_custom_call.1} parent=11 // pred_check
          %p235 = pneg %p110
        $region22: #{tpu_custom_call.1} parent=11 // pred_check_branch
          %237 = sbr.rel (%p235) target = $region24
        $region23: #{tpu_custom_call.1} parent=11 // pred_region
          %s239 = ssub.s32 512, 512
          %240 = vsyncadd [#allocation6], %s239
          %s241 = sshll.u32 [#allocation7], 4
          %s242 = int_to_ptr.vmem [resolvable:$true] %s241
          %247 = dma.hbm_to_vmem [thread:$0]  %s3, 512, %s242, [#allocation6], 128, 128, 8
        $region24: #{tpu_custom_call.1} parent=11 // pred_fallthru
          _
        // Predicated region
        $region25: #{tpu_custom_call.1} parent=11 // pred_check
          %p248 = pneg %p131
        $region26: #{tpu_custom_call.1} parent=11 // pred_check_branch
          %250 = sbr.rel (%p248) target = $region28
        $region27: #{tpu_custom_call.1} parent=11 // pred_region
          _
        $region28: #{tpu_custom_call.1} parent=11 // pred_fallthru
          _
        // Predicated region
        $region29: #{tpu_custom_call.1} parent=11 // pred_check
          %p251 = pneg %p152
        $region30: #{tpu_custom_call.1} parent=11 // pred_check_branch
          %253 = sbr.rel (%p251) target = $region32
        $region31: #{tpu_custom_call.1} parent=11 // pred_region
          %s255 = ssub.s32 512, 512
          %256 = vsyncadd [#allocation9], %s255
          %s257 = sshll.u32 [#allocation8], 4
          %s258 = int_to_ptr.vmem [resolvable:$true] %s257
          %263 = dma.hbm_to_vmem [thread:$0]  %s5, 512, %s258, [#allocation9], 128, 128, 8
        $region32: #{tpu_custom_call.1} parent=11 // pred_fallthru
          _
      $region12: #{tpu_custom_call.1} parent=5 // pred_fallthru
        _
      %p264 = scmp.lt.s32.totalorder %s21, 2
      // Predicated region
      $region33: #{tpu_custom_call.1} parent=5 // pred_check
        %p265 = pneg %p264
      $region34: #{tpu_custom_call.1} parent=5 // pred_check_branch
        %267 = sbr.rel (%p265) target = $region36
      $region35: #{tpu_custom_call.1} parent=5 // pred_region
        // Predicated region
        $region37: #{tpu_custom_call.1} parent=35 // pred_check
          %p268 = pneg %p41
        $region38: #{tpu_custom_call.1} parent=35 // pred_check_branch
          %270 = sbr.rel (%p268) target = $region40
        $region39: #{tpu_custom_call.1} parent=35 // pred_region
          %s271 = sand.u32 %s31, 1
          %s272 = scalar_lea.sflag [#allocation3], %s271
          %s273 = sand.u32 %s31, 1
          %s274 = smul.addr %s273, 8
          %s275 = scalar_lea.vmem [#allocation2], %s274
          %s277 = ssub.s32 128, 128
          %278 = vsyncadd %s272, %s277
          %s279 = smul.addr %s21, 128
          %s280 = scalar_lea.hbm %s0, %s279
          %s282 = sshll.u32 %s275, 4
          %s283 = int_to_ptr.vmem [resolvable:$true] %s282
          %285 = dma.hbm_to_vmem [thread:$0]  %s280, 128, %s283, %s272
        $region40: #{tpu_custom_call.1} parent=35 // pred_fallthru
          _
        // Predicated region
        $region41: #{tpu_custom_call.1} parent=35 // pred_check
          %p286 = pneg %p172
        $region42: #{tpu_custom_call.1} parent=35 // pred_check_branch
          %288 = sbr.rel (%p286) target = $region44
        $region43: #{tpu_custom_call.1} parent=35 // pred_region
          %p289 = scmp.lt.s32.totalorder %s21, 1
          %s290 = scalar_select %p289, %s21, 1
          %s291 = scalar_lea.vmem %s6, %s290
        $region44: #{tpu_custom_call.1} parent=35 // pred_fallthru
          _
      $region36: #{tpu_custom_call.1} parent=5 // pred_fallthru
        _
      %p292 = scmp.le.s32.totalorder 1, %s21
      %p293 = scmp.lt.s32.totalorder %s21, 3
      %p294 = pnand %p292, %p293
      %p295 = pneg %p294
      // Predicated region
      $region45: #{tpu_custom_call.1} parent=5 // pred_check
        _
      $region46: #{tpu_custom_call.1} parent=5 // pred_check_branch
        %297 = sbr.rel (%p294) target = $region48
      $region47: #{tpu_custom_call.1} parent=5 // pred_region
        %s298 = ssub.s32 %s21, 1
        %s299 = sand.u32 %s34, 1
        %s300 = scalar_lea.sflag [#allocation3], %s299
        %s301 = sand.u32 %s34, 1
        %s302 = smul.addr %s301, 8
        %s303 = scalar_lea.vmem [#allocation2], %s302
        // Predicated region
        $region49: #{tpu_custom_call.1} parent=47 // pred_check
          %p304 = pneg %p47
        $region50: #{tpu_custom_call.1} parent=47 // pred_check_branch
          %306 = sbr.rel (%p304) target = $region52
        $region51: #{tpu_custom_call.1} parent=47 // pred_region
          %307 = dma.done %s300, 128
        $region52: #{tpu_custom_call.1} parent=47 // pred_fallthru
          _
        // Predicated region
        $region53: #{tpu_custom_call.1} parent=47 // pred_check
          %p308 = pneg %p68
        $region54: #{tpu_custom_call.1} parent=47 // pred_check_branch
          %310 = sbr.rel (%p308) target = $region56
        $region55: #{tpu_custom_call.1} parent=47 // pred_region
          %311 = dma.done [#allocation6], 512
        $region56: #{tpu_custom_call.1} parent=47 // pred_fallthru
          _
        // Predicated region
        $region57: #{tpu_custom_call.1} parent=47 // pred_check
          %p312 = pneg %p110
        $region58: #{tpu_custom_call.1} parent=47 // pred_check_branch
          %314 = sbr.rel (%p312) target = $region60
        $region59: #{tpu_custom_call.1} parent=47 // pred_region
          %315 = dma.done [#allocation6], 512
        $region60: #{tpu_custom_call.1} parent=47 // pred_fallthru
          _
        // Predicated region
        $region61: #{tpu_custom_call.1} parent=47 // pred_check
          %p316 = pneg %p152
        $region62: #{tpu_custom_call.1} parent=47 // pred_check_branch
          %318 = sbr.rel (%p316) target = $region64
        $region63: #{tpu_custom_call.1} parent=47 // pred_region
          %319 = dma.done [#allocation9], 512
        $region64: #{tpu_custom_call.1} parent=47 // pred_fallthru
          _
        %s320 = sand.u32 %s34, 1
        %s321 = scalar_lea.sflag [#allocation3], %s320
        %s322 = sand.u32 %s34, 1
        %s323 = smul.addr %s322, 8
        %s324 = scalar_lea.vmem [#allocation2], %s323
        %p325 = pneg %p47
        %p326 = pneg %p44
        %p327 = pneg %p68
        %p328 = pneg %p65
        %p329 = pneg %p89
        %p330 = pneg %p86
        %p331 = pneg %p110
        %p332 = pneg %p107
        %p333 = pneg %p131
        %p334 = pneg %p128
        %p335 = pneg %p152
        %p336 = pneg %p149
        %p337 = scmp.lt.s32.totalorder %s26, 1
        %s338 = scalar_select %p337, %s26, 1
        %s339 = scalar_lea.vmem %s6, %s338
        %p340 = pneg %p178
        %p341 = pneg %p175
        %p342 = pneg %p204
        %p343 = pneg %p201
        %s344 = sand.u32 %s191, 1
        %s345 = scalar_lea.sflag [#allocation4], %s344
        %s346 = sand.u32 %s191, 1
        %s347 = smul.addr %s346, 8
        %s348 = scalar_lea.vmem [#allocation10], %s347
        %p349 = scmp.lt.s32.totalorder %s26, 1
        %s350 = scalar_select %p349, %s26, 1
        %s351 = scalar_lea.vmem %s6, %s350
        %v352 = vld [vmem:[%s303] sm:$0xff]
        %v353 = vld [vmem:[#allocation5] sm:$0xff]
        %v354 = vld [vmem:[#allocation5 + $0x8] sm:$0xff]
        %v355 = vld [vmem:[#allocation5 + $0x10] sm:$0xff]
        %v356 = vld [vmem:[#allocation5 + $0x18] sm:$0xff]
        %v357 = vld [vmem:[%s2] sm:$0x1]
        %v359 = vlaneseq
        %v360 = vshrl.u32 %v359, 7
        %v361 = vsub.s32 0, %v360
        %v362 = vrot.slane %v357, %v361
        %vm364 = vcmask 261120
        %v366 = vsel %vm364, %v352, 0
        %368 = vmatprep.subr.mxu0 0.0
        %369 = vmatpush1.msra.mxu0 %v353
        %370 = vmatprep.subr.mxu0 0.0
        %371 = vmatpush1.msra.mxu0 %v354
        %372 = vmatprep.subr.mxu0 0.0
        %373 = vmatpush1.msra.mxu0 %v355
        %374 = vmatprep.subr.mxu0 0.0
        %375 = vmatpush1.msra.mxu0 %v356
        %376 = vmatprep.subr.mxu0 0.0
        %377 = vmatpush1.msra.mxu0 0.0
        %378 = vmatprep.subr.mxu0 0.0
        %379 = vmatpush1.msra.mxu0 0.0
        %380 = vmatprep.subr.mxu0 0.0
        %381 = vmatpush1.msra.mxu0 0.0
        %382 = vmatprep.subr.mxu0 0.0
        %383 = vmatpush1.msra.mxu0 0.0
        %384 = vmatprep.subr.mxu0 0.0
        %385 = vmatpush1.msra.mxu0 0.0
        %386 = vmatprep.subr.mxu0 0.0
        %387 = vmatpush1.msra.mxu0 0.0
        %388 = vmatprep.subr.mxu0 0.0
        %389 = vmatpush1.msra.mxu0 0.0
        %390 = vmatprep.subr.mxu0 0.0
        %391 = vmatpush1.msra.mxu0 0.0
        %392 = vmatprep.subr.mxu0 0.0
        %393 = vmatpush1.msra.mxu0 0.0
        %394 = vmatprep.subr.mxu0 0.0
        %395 = vmatpush1.msra.mxu0 0.0
        %396 = vmatprep.subr.mxu0 0.0
        %397 = vmatpush1.msra.mxu0 0.0
        %398 = vmatprep.subr.mxu0 0.0
        %399 = vmatpush1.msra.mxu0 0.0
        %400 = vmatprep.subr.mxu0 0.0
        %401 = vmatpush1.msra.mxu0 0.0
        %402 = vmatprep.subr.mxu0 0.0
        %403 = vmatpush1.msra.mxu0 0.0
        %404 = vmatprep.subr.mxu0 0.0
        %405 = vmatpush1.msra.mxu0 0.0
        %406 = vmatprep.subr.mxu0 0.0
        %407 = vmatpush1.msra.mxu0 0.0
        %408 = vmatprep.subr.mxu0 0.0
        %409 = vmatpush1.msra.mxu0 0.0
        %410 = vmatprep.subr.mxu0 0.0
        %411 = vmatpush1.msra.mxu0 0.0
        %412 = vmatprep.subr.mxu0 0.0
        %413 = vmatpush1.msra.mxu0 0.0
        %414 = vmatprep.subr.mxu0 0.0
        %415 = vmatpush1.msra.mxu0 0.0
        %416 = vmatprep.subr.mxu0 0.0
        %417 = vmatpush1.msra.mxu0 0.0
        %418 = vmatprep.subr.mxu0 0.0
        %419 = vmatpush1.msra.mxu0 0.0
        %420 = vmatprep.subr.mxu0 0.0
        %421 = vmatpush1.msra.mxu0 0.0
        %422 = vmatprep.subr.mxu0 0.0
        %423 = vmatpush1.msra.mxu0 0.0
        %424 = vmatprep.subr.mxu0 0.0
        %425 = vmatpush1.msra.mxu0 0.0
        %426 = vmatprep.subr.mxu0 0.0
        %427 = vmatpush1.msra.mxu0 0.0
        %428 = vmatprep.subr.mxu0 0.0
        %429 = vmatpush1.msra.mxu0 0.0
        %430 = vmatprep.subr.mxu0 0.0
        %431 = vmatpush1.msra.mxu0 0.0
        %432 = vmatprep.mubr.f32.mxu0 0.0
        %433 = vmatmul.mubr.f32.gmra.mrb[0].mxu0 %v366
        %v434 = vpop.f32.mrb[0].mxu0
        %v435 = vadd.f32 %v362, %v434
        %v436 = vpop.f32.mrb[0].mxu0
        %437 = vdwg.mxu0
        %v438 = vld [vmem:[%s351] sm:$0x1]
        %v439 = vld [vmem:[#allocation8] sm:$0xff]
        %441 = vrot.lane.b32.xlu0 %v435, 96
        %v442 = vpop.permute.xlu0 %441
        %vm443 = vcmask 64512
        %v444 = vsel %vm443, %v435, 0
        %v446 = vsel %vm443, %v442, 0
        %448 = vmatprep.subr.mxu0 0.0
        %449 = vmatpush1.xpose.msra.mxu0 %v446
        %450 = vmatprep.subr.mxu0 0.0
        %451 = vmatpush1.xpose.msra.mxu0 0.0
        %452 = vmatprep.subr.mxu0 0.0
        %453 = vmatpush1.xpose.msra.mxu0 0.0
        %454 = vmatprep.subr.mxu0 0.0
        %455 = vmatpush1.xpose.msra.mxu0 0.0
        %456 = vmatprep.subr.mxu0 0.0
        %457 = vmatpush1.xpose.msra.mxu0 0.0
        %458 = vmatprep.subr.mxu0 0.0
        %459 = vmatpush1.xpose.msra.mxu0 0.0
        %460 = vmatprep.subr.mxu0 0.0
        %461 = vmatpush1.xpose.msra.mxu0 0.0
        %462 = vmatprep.subr.mxu0 0.0
        %463 = vmatpush1.xpose.msra.mxu0 0.0
        %464 = vmatprep.subr.mxu0 0.0
        %465 = vmatpush1.xpose.msra.mxu0 0.0
        %466 = vmatprep.subr.mxu0 0.0
        %467 = vmatpush1.xpose.msra.mxu0 0.0
        %468 = vmatprep.subr.mxu0 0.0
        %469 = vmatpush1.xpose.msra.mxu0 0.0
        %470 = vmatprep.subr.mxu0 0.0
        %471 = vmatpush1.xpose.msra.mxu0 0.0
        %472 = vmatprep.subr.mxu0 0.0
        %473 = vmatpush1.xpose.msra.mxu0 0.0
        %474 = vmatprep.subr.mxu0 0.0
        %475 = vmatpush1.xpose.msra.mxu0 0.0
        %476 = vmatprep.subr.mxu0 0.0
        %477 = vmatpush1.xpose.msra.mxu0 0.0
        %478 = vmatprep.subr.mxu0 0.0
        %479 = vmatpush1.xpose.msra.mxu0 0.0
        %480 = vmatprep.subr.mxu0 0.0
        %481 = vmatpush1.xpose.msra.mxu0 0.0
        %482 = vmatprep.subr.mxu0 0.0
        %483 = vmatpush1.xpose.msra.mxu0 0.0
        %484 = vmatprep.subr.mxu0 0.0
        %485 = vmatpush1.xpose.msra.mxu0 0.0
        %486 = vmatprep.subr.mxu0 0.0
        %487 = vmatpush1.xpose.msra.mxu0 0.0
        %488 = vmatprep.subr.mxu0 0.0
        %489 = vmatpush1.xpose.msra.mxu0 0.0
        %490 = vmatprep.subr.mxu0 0.0
        %491 = vmatpush1.xpose.msra.mxu0 0.0
        %492 = vmatprep.subr.mxu0 0.0
        %493 = vmatpush1.xpose.msra.mxu0 0.0
        %494 = vmatprep.subr.mxu0 0.0
        %495 = vmatpush1.xpose.msra.mxu0 0.0
        %496 = vmatprep.subr.mxu0 0.0
        %497 = vmatpush1.xpose.msra.mxu0 0.0
        %498 = vmatprep.subr.mxu0 0.0
        %499 = vmatpush1.xpose.msra.mxu0 0.0
        %500 = vmatprep.subr.mxu0 0.0
        %501 = vmatpush1.xpose.msra.mxu0 0.0
        %502 = vmatprep.subr.mxu0 0.0
        %503 = vmatpush1.xpose.msra.mxu0 0.0
        %504 = vmatprep.subr.mxu0 0.0
        %505 = vmatpush1.xpose.msra.mxu0 0.0
        %506 = vmatprep.subr.mxu0 0.0
        %507 = vmatpush1.xpose.msra.mxu0 0.0
        %508 = vmatprep.subr.mxu0 0.0
        %509 = vmatpush1.xpose.msra.mxu0 0.0
        %510 = vmatprep.subr.mxu0 0.0
        %511 = vmatpush1.xpose.msra.mxu0 0.0
        %512 = vmatprep.mubr.f32.mxu0 0.0
        %513 = vmatmul.mubr.f32.gmra.mrb[0].mxu0 %v444
        %v514 = vpop.f32.mrb[0].mxu0
        %v515 = vadd.f32 %v439, %v514
        %v516 = vpop.f32.mrb[0].mxu0
        %517 = vdwg.mxu0
        %v519 = vlaneseq
        %v520 = vshrl.u32 %v519, 7
        %v521 = vsub.s32 0, %v520
        %v522 = vrot.slane %v438, %v521
        %v524 = vadd.f32 %v515, %v522
        %v525 = vsel %vm443, %v524, -inf
        %526 = vmax.xlane.f32.xlu0 %v525
        %v527 = vpop.xlane.xlu0 %526
        %v528 = vsub.f32 %v524, %v527
        %v529 = vmul.f32 %v528, 1.442695
        %v530 = vpow.pop %v529
        %v531 = vsel %vm443, %v530, 0.0
        %532 = vadd.xlane.f32.xlu0 %v531
        %v533 = vpop.xlane.xlu0 %532
        %534 = vrot.lane.b32.xlu0 %v435, 64
        %v535 = vpop.permute.xlu0 %534
        %v538 = vsel %vm443, %v530, 0
        %540 = vmatprep.subr.mxu0 0.0
        %541 = vmatpush1.msra.mxu0 %v535
        %542 = vmatprep.subr.mxu0 0.0
        %543 = vmatpush1.msra.mxu0 0.0
        %544 = vmatprep.subr.mxu0 0.0
        %545 = vmatpush1.msra.mxu0 0.0
        %546 = vmatprep.subr.mxu0 0.0
        %547 = vmatpush1.msra.mxu0 0.0
        %548 = vmatprep.subr.mxu0 0.0
        %549 = vmatpush1.msra.mxu0 0.0
        %550 = vmatprep.subr.mxu0 0.0
        %551 = vmatpush1.msra.mxu0 0.0
        %552 = vmatprep.subr.mxu0 0.0
        %553 = vmatpush1.msra.mxu0 0.0
        %554 = vmatprep.subr.mxu0 0.0
        %555 = vmatpush1.msra.mxu0 0.0
        %556 = vmatprep.subr.mxu0 0.0
        %557 = vmatpush1.msra.mxu0 0.0
        %558 = vmatprep.subr.mxu0 0.0
        %559 = vmatpush1.msra.mxu0 0.0
        %560 = vmatprep.subr.mxu0 0.0
        %561 = vmatpush1.msra.mxu0 0.0
        %562 = vmatprep.subr.mxu0 0.0
        %563 = vmatpush1.msra.mxu0 0.0
        %564 = vmatprep.subr.mxu0 0.0
        %565 = vmatpush1.msra.mxu0 0.0
        %566 = vmatprep.subr.mxu0 0.0
        %567 = vmatpush1.msra.mxu0 0.0
        %568 = vmatprep.subr.mxu0 0.0
        %569 = vmatpush1.msra.mxu0 0.0
        %570 = vmatprep.subr.mxu0 0.0
        %571 = vmatpush1.msra.mxu0 0.0
        %572 = vmatprep.subr.mxu0 0.0
        %573 = vmatpush1.msra.mxu0 0.0
        %574 = vmatprep.subr.mxu0 0.0
        %575 = vmatpush1.msra.mxu0 0.0
        %576 = vmatprep.subr.mxu0 0.0
        %577 = vmatpush1.msra.mxu0 0.0
        %578 = vmatprep.subr.mxu0 0.0
        %579 = vmatpush1.msra.mxu0 0.0
        %580 = vmatprep.subr.mxu0 0.0
        %581 = vmatpush1.msra.mxu0 0.0
        %582 = vmatprep.subr.mxu0 0.0
        %583 = vmatpush1.msra.mxu0 0.0
        %584 = vmatprep.subr.mxu0 0.0
        %585 = vmatpush1.msra.mxu0 0.0
        %586 = vmatprep.subr.mxu0 0.0
        %587 = vmatpush1.msra.mxu0 0.0
        %588 = vmatprep.subr.mxu0 0.0
        %589 = vmatpush1.msra.mxu0 0.0
        %590 = vmatprep.subr.mxu0 0.0
        %591 = vmatpush1.msra.mxu0 0.0
        %592 = vmatprep.subr.mxu0 0.0
        %593 = vmatpush1.msra.mxu0 0.0
        %594 = vmatprep.subr.mxu0 0.0
        %595 = vmatpush1.msra.mxu0 0.0
        %596 = vmatprep.subr.mxu0 0.0
        %597 = vmatpush1.msra.mxu0 0.0
        %598 = vmatprep.subr.mxu0 0.0
        %599 = vmatpush1.msra.mxu0 0.0
        %600 = vmatprep.subr.mxu0 0.0
        %601 = vmatpush1.msra.mxu0 0.0
        %602 = vmatprep.subr.mxu0 0.0
        %603 = vmatpush1.msra.mxu0 0.0
        %604 = vmatprep.mubr.f32.mxu0 0.0
        %605 = vmatmul.mubr.f32.gmra.mrb[0].mxu0 %v538
        %v606 = vpop.f32.mrb[0].mxu0
        %v607 = vadd.f32 0.0, %v606
        %v608 = vpop.f32.mrb[0].mxu0
        %609 = vdwg.mxu0
        %v610 = vrcp.pop %v533
        %v611 = vmul.f32 %v607, %v610
        %s612 = scalar_lea.vmem [#allocation8], 8
        %v613 = vld [vmem:[%s612] sm:$0xff]
        %614 = vrot.lane.b32.xlu0 %v435, 120
        %v615 = vpop.permute.xlu0 %614
        %616 = vrot.lane.b32.xlu0 %v435, 88
        %v617 = vpop.permute.xlu0 %616
        %v618 = vsel %vm443, %v615, 0
        %v620 = vsel %vm443, %v617, 0
        %622 = vmatprep.subr.mxu0 0.0
        %623 = vmatpush1.xpose.msra.mxu0 %v620
        %624 = vmatprep.subr.mxu0 0.0
        %625 = vmatpush1.xpose.msra.mxu0 0.0
        %626 = vmatprep.subr.mxu0 0.0
        %627 = vmatpush1.xpose.msra.mxu0 0.0
        %628 = vmatprep.subr.mxu0 0.0
        %629 = vmatpush1.xpose.msra.mxu0 0.0
        %630 = vmatprep.subr.mxu0 0.0
        %631 = vmatpush1.xpose.msra.mxu0 0.0
        %632 = vmatprep.subr.mxu0 0.0
        %633 = vmatpush1.xpose.msra.mxu0 0.0
        %634 = vmatprep.subr.mxu0 0.0
        %635 = vmatpush1.xpose.msra.mxu0 0.0
        %636 = vmatprep.subr.mxu0 0.0
        %637 = vmatpush1.xpose.msra.mxu0 0.0
        %638 = vmatprep.subr.mxu0 0.0
        %639 = vmatpush1.xpose.msra.mxu0 0.0
        %640 = vmatprep.subr.mxu0 0.0
        %641 = vmatpush1.xpose.msra.mxu0 0.0
        %642 = vmatprep.subr.mxu0 0.0
        %643 = vmatpush1.xpose.msra.mxu0 0.0
        %644 = vmatprep.subr.mxu0 0.0
        %645 = vmatpush1.xpose.msra.mxu0 0.0
        %646 = vmatprep.subr.mxu0 0.0
        %647 = vmatpush1.xpose.msra.mxu0 0.0
        %648 = vmatprep.subr.mxu0 0.0
        %649 = vmatpush1.xpose.msra.mxu0 0.0
        %650 = vmatprep.subr.mxu0 0.0
        %651 = vmatpush1.xpose.msra.mxu0 0.0
        %652 = vmatprep.subr.mxu0 0.0
        %653 = vmatpush1.xpose.msra.mxu0 0.0
        %654 = vmatprep.subr.mxu0 0.0
        %655 = vmatpush1.xpose.msra.mxu0 0.0
        %656 = vmatprep.subr.mxu0 0.0
        %657 = vmatpush1.xpose.msra.mxu0 0.0
        %658 = vmatprep.subr.mxu0 0.0
        %659 = vmatpush1.xpose.msra.mxu0 0.0
        %660 = vmatprep.subr.mxu0 0.0
        %661 = vmatpush1.xpose.msra.mxu0 0.0
        %662 = vmatprep.subr.mxu0 0.0
        %663 = vmatpush1.xpose.msra.mxu0 0.0
        %664 = vmatprep.subr.mxu0 0.0
        %665 = vmatpush1.xpose.msra.mxu0 0.0
        %666 = vmatprep.subr.mxu0 0.0
        %667 = vmatpush1.xpose.msra.mxu0 0.0
        %668 = vmatprep.subr.mxu0 0.0
        %669 = vmatpush1.xpose.msra.mxu0 0.0
        %670 = vmatprep.subr.mxu0 0.0
        %671 = vmatpush1.xpose.msra.mxu0 0.0
        %672 = vmatprep.subr.mxu0 0.0
        %673 = vmatpush1.xpose.msra.mxu0 0.0
        %674 = vmatprep.subr.mxu0 0.0
        %675 = vmatpush1.xpose.msra.mxu0 0.0
        %676 = vmatprep.subr.mxu0 0.0
        %677 = vmatpush1.xpose.msra.mxu0 0.0
        %678 = vmatprep.subr.mxu0 0.0
        %679 = vmatpush1.xpose.msra.mxu0 0.0
        %680 = vmatprep.subr.mxu0 0.0
        %681 = vmatpush1.xpose.msra.mxu0 0.0
        %682 = vmatprep.subr.mxu0 0.0
        %683 = vmatpush1.xpose.msra.mxu0 0.0
        %684 = vmatprep.subr.mxu0 0.0
        %685 = vmatpush1.xpose.msra.mxu0 0.0
        %686 = vmatprep.mubr.f32.mxu0 0.0
        %687 = vmatmul.mubr.f32.gmra.mrb[0].mxu0 %v618
        %v688 = vpop.f32.mrb[0].mxu0
        %v689 = vadd.f32 %v613, %v688
        %v690 = vpop.f32.mrb[0].mxu0
        %691 = vdwg.mxu0
        %v692 = vadd.f32 %v689, %v522
        %v693 = vsel %vm443, %v692, -inf
        %694 = vmax.xlane.f32.xlu0 %v693
        %v695 = vpop.xlane.xlu0 %694
        %v696 = vsub.f32 %v692, %v695
        %v697 = vmul.f32 %v696, 1.442695
        %v698 = vpow.pop %v697
        %v699 = vsel %vm443, %v698, 0.0
        %700 = vadd.xlane.f32.xlu0 %v699
        %v701 = vpop.xlane.xlu0 %700
        %702 = vrot.lane.b32.xlu0 %v435, 56
        %v703 = vpop.permute.xlu0 %702
        %v706 = vsel %vm443, %v698, 0
        %708 = vmatprep.subr.mxu0 0.0
        %709 = vmatpush1.msra.mxu0 %v703
        %710 = vmatprep.subr.mxu0 0.0
        %711 = vmatpush1.msra.mxu0 0.0
        %712 = vmatprep.subr.mxu0 0.0
        %713 = vmatpush1.msra.mxu0 0.0
        %714 = vmatprep.subr.mxu0 0.0
        %715 = vmatpush1.msra.mxu0 0.0
        %716 = vmatprep.subr.mxu0 0.0
        %717 = vmatpush1.msra.mxu0 0.0
        %718 = vmatprep.subr.mxu0 0.0
        %719 = vmatpush1.msra.mxu0 0.0
        %720 = vmatprep.subr.mxu0 0.0
        %721 = vmatpush1.msra.mxu0 0.0
        %722 = vmatprep.subr.mxu0 0.0
        %723 = vmatpush1.msra.mxu0 0.0
        %724 = vmatprep.subr.mxu0 0.0
        %725 = vmatpush1.msra.mxu0 0.0
        %726 = vmatprep.subr.mxu0 0.0
        %727 = vmatpush1.msra.mxu0 0.0
        %728 = vmatprep.subr.mxu0 0.0
        %729 = vmatpush1.msra.mxu0 0.0
        %730 = vmatprep.subr.mxu0 0.0
        %731 = vmatpush1.msra.mxu0 0.0
        %732 = vmatprep.subr.mxu0 0.0
        %733 = vmatpush1.msra.mxu0 0.0
        %734 = vmatprep.subr.mxu0 0.0
        %735 = vmatpush1.msra.mxu0 0.0
        %736 = vmatprep.subr.mxu0 0.0
        %737 = vmatpush1.msra.mxu0 0.0
        %738 = vmatprep.subr.mxu0 0.0
        %739 = vmatpush1.msra.mxu0 0.0
        %740 = vmatprep.subr.mxu0 0.0
        %741 = vmatpush1.msra.mxu0 0.0
        %742 = vmatprep.subr.mxu0 0.0
        %743 = vmatpush1.msra.mxu0 0.0
        %744 = vmatprep.subr.mxu0 0.0
        %745 = vmatpush1.msra.mxu0 0.0
        %746 = vmatprep.subr.mxu0 0.0
        %747 = vmatpush1.msra.mxu0 0.0
        %748 = vmatprep.subr.mxu0 0.0
        %749 = vmatpush1.msra.mxu0 0.0
        %750 = vmatprep.subr.mxu0 0.0
        %751 = vmatpush1.msra.mxu0 0.0
        %752 = vmatprep.subr.mxu0 0.0
        %753 = vmatpush1.msra.mxu0 0.0
        %754 = vmatprep.subr.mxu0 0.0
        %755 = vmatpush1.msra.mxu0 0.0
        %756 = vmatprep.subr.mxu0 0.0
        %757 = vmatpush1.msra.mxu0 0.0
        %758 = vmatprep.subr.mxu0 0.0
        %759 = vmatpush1.msra.mxu0 0.0
        %760 = vmatprep.subr.mxu0 0.0
        %761 = vmatpush1.msra.mxu0 0.0
        %762 = vmatprep.subr.mxu0 0.0
        %763 = vmatpush1.msra.mxu0 0.0
        %764 = vmatprep.subr.mxu0 0.0
        %765 = vmatpush1.msra.mxu0 0.0
        %766 = vmatprep.subr.mxu0 0.0
        %767 = vmatpush1.msra.mxu0 0.0
        %768 = vmatprep.subr.mxu0 0.0
        %769 = vmatpush1.msra.mxu0 0.0
        %770 = vmatprep.subr.mxu0 0.0
        %771 = vmatpush1.msra.mxu0 0.0
        %772 = vmatprep.mubr.f32.mxu0 0.0
        %773 = vmatmul.mubr.f32.gmra.mrb[0].mxu0 %v706
        %v774 = vpop.f32.mrb[0].mxu0
        %v775 = vadd.f32 0.0, %v774
        %v776 = vpop.f32.mrb[0].mxu0
        %777 = vdwg.mxu0
        %v778 = vrcp.pop %v701
        %v779 = vmul.f32 %v775, %v778
        %s780 = scalar_lea.vmem [#allocation8], 16
        %v781 = vld [vmem:[%s780] sm:$0xff]
        %782 = vrot.lane.b32.xlu0 %v435, 112
        %v783 = vpop.permute.xlu0 %782
        %784 = vrot.lane.b32.xlu0 %v435, 80
        %v785 = vpop.permute.xlu0 %784
        %v786 = vsel %vm443, %v783, 0
        %v788 = vsel %vm443, %v785, 0
        %790 = vmatprep.subr.mxu0 0.0
        %791 = vmatpush1.xpose.msra.mxu0 %v788
        %792 = vmatprep.subr.mxu0 0.0
        %793 = vmatpush1.xpose.msra.mxu0 0.0
        %794 = vmatprep.subr.mxu0 0.0
        %795 = vmatpush1.xpose.msra.mxu0 0.0
        %796 = vmatprep.subr.mxu0 0.0
        %797 = vmatpush1.xpose.msra.mxu0 0.0
        %798 = vmatprep.subr.mxu0 0.0
        %799 = vmatpush1.xpose.msra.mxu0 0.0
        %800 = vmatprep.subr.mxu0 0.0
        %801 = vmatpush1.xpose.msra.mxu0 0.0
        %802 = vmatprep.subr.mxu0 0.0
        %803 = vmatpush1.xpose.msra.mxu0 0.0
        %804 = vmatprep.subr.mxu0 0.0
        %805 = vmatpush1.xpose.msra.mxu0 0.0
        %806 = vmatprep.subr.mxu0 0.0
        %807 = vmatpush1.xpose.msra.mxu0 0.0
        %808 = vmatprep.subr.mxu0 0.0
        %809 = vmatpush1.xpose.msra.mxu0 0.0
        %810 = vmatprep.subr.mxu0 0.0
        %811 = vmatpush1.xpose.msra.mxu0 0.0
        %812 = vmatprep.subr.mxu0 0.0
        %813 = vmatpush1.xpose.msra.mxu0 0.0
        %814 = vmatprep.subr.mxu0 0.0
        %815 = vmatpush1.xpose.msra.mxu0 0.0
        %816 = vmatprep.subr.mxu0 0.0
        %817 = vmatpush1.xpose.msra.mxu0 0.0
        %818 = vmatprep.subr.mxu0 0.0
        %819 = vmatpush1.xpose.msra.mxu0 0.0
        %820 = vmatprep.subr.mxu0 0.0
        %821 = vmatpush1.xpose.msra.mxu0 0.0
        %822 = vmatprep.subr.mxu0 0.0
        %823 = vmatpush1.xpose.msra.mxu0 0.0
        %824 = vmatprep.subr.mxu0 0.0
        %825 = vmatpush1.xpose.msra.mxu0 0.0
        %826 = vmatprep.subr.mxu0 0.0
        %827 = vmatpush1.xpose.msra.mxu0 0.0
        %828 = vmatprep.subr.mxu0 0.0
        %829 = vmatpush1.xpose.msra.mxu0 0.0
        %830 = vmatprep.subr.mxu0 0.0
        %831 = vmatpush1.xpose.msra.mxu0 0.0
        %832 = vmatprep.subr.mxu0 0.0
        %833 = vmatpush1.xpose.msra.mxu0 0.0
        %834 = vmatprep.subr.mxu0 0.0
        %835 = vmatpush1.xpose.msra.mxu0 0.0
        %836 = vmatprep.subr.mxu0 0.0
        %837 = vmatpush1.xpose.msra.mxu0 0.0
        %838 = vmatprep.subr.mxu0 0.0
        %839 = vmatpush1.xpose.msra.mxu0 0.0
        %840 = vmatprep.subr.mxu0 0.0
        %841 = vmatpush1.xpose.msra.mxu0 0.0
        %842 = vmatprep.subr.mxu0 0.0
        %843 = vmatpush1.xpose.msra.mxu0 0.0
        %844 = vmatprep.subr.mxu0 0.0
        %845 = vmatpush1.xpose.msra.mxu0 0.0
        %846 = vmatprep.subr.mxu0 0.0
        %847 = vmatpush1.xpose.msra.mxu0 0.0
        %848 = vmatprep.subr.mxu0 0.0
        %849 = vmatpush1.xpose.msra.mxu0 0.0
        %850 = vmatprep.subr.mxu0 0.0
        %851 = vmatpush1.xpose.msra.mxu0 0.0
        %852 = vmatprep.subr.mxu0 0.0
        %853 = vmatpush1.xpose.msra.mxu0 0.0
        %854 = vmatprep.mubr.f32.mxu0 0.0
        %855 = vmatmul.mubr.f32.gmra.mrb[0].mxu0 %v786
        %v856 = vpop.f32.mrb[0].mxu0
        %v857 = vadd.f32 %v781, %v856
        %v858 = vpop.f32.mrb[0].mxu0
        %859 = vdwg.mxu0
        %v860 = vadd.f32 %v857, %v522
        %v861 = vsel %vm443, %v860, -inf
        %862 = vmax.xlane.f32.xlu0 %v861
        %v863 = vpop.xlane.xlu0 %862
        %v864 = vsub.f32 %v860, %v863
        %v865 = vmul.f32 %v864, 1.442695
        %v866 = vpow.pop %v865
        %v867 = vsel %vm443, %v866, 0.0
        %868 = vadd.xlane.f32.xlu0 %v867
        %v869 = vpop.xlane.xlu0 %868
        %870 = vrot.lane.b32.xlu0 %v435, 48
        %v871 = vpop.permute.xlu0 %870
        %v874 = vsel %vm443, %v866, 0
        %876 = vmatprep.subr.mxu0 0.0
        %877 = vmatpush1.msra.mxu0 %v871
        %878 = vmatprep.subr.mxu0 0.0
        %879 = vmatpush1.msra.mxu0 0.0
        %880 = vmatprep.subr.mxu0 0.0
        %881 = vmatpush1.msra.mxu0 0.0
        %882 = vmatprep.subr.mxu0 0.0
        %883 = vmatpush1.msra.mxu0 0.0
        %884 = vmatprep.subr.mxu0 0.0
        %885 = vmatpush1.msra.mxu0 0.0
        %886 = vmatprep.subr.mxu0 0.0
        %887 = vmatpush1.msra.mxu0 0.0
        %888 = vmatprep.subr.mxu0 0.0
        %889 = vmatpush1.msra.mxu0 0.0
        %890 = vmatprep.subr.mxu0 0.0
        %891 = vmatpush1.msra.mxu0 0.0
        %892 = vmatprep.subr.mxu0 0.0
        %893 = vmatpush1.msra.mxu0 0.0
        %894 = vmatprep.subr.mxu0 0.0
        %895 = vmatpush1.msra.mxu0 0.0
        %896 = vmatprep.subr.mxu0 0.0
        %897 = vmatpush1.msra.mxu0 0.0
        %898 = vmatprep.subr.mxu0 0.0
        %899 = vmatpush1.msra.mxu0 0.0
        %900 = vmatprep.subr.mxu0 0.0
        %901 = vmatpush1.msra.mxu0 0.0
        %902 = vmatprep.subr.mxu0 0.0
        %903 = vmatpush1.msra.mxu0 0.0
        %904 = vmatprep.subr.mxu0 0.0
        %905 = vmatpush1.msra.mxu0 0.0
        %906 = vmatprep.subr.mxu0 0.0
        %907 = vmatpush1.msra.mxu0 0.0
        %908 = vmatprep.subr.mxu0 0.0
        %909 = vmatpush1.msra.mxu0 0.0
        %910 = vmatprep.subr.mxu0 0.0
        %911 = vmatpush1.msra.mxu0 0.0
        %912 = vmatprep.subr.mxu0 0.0
        %913 = vmatpush1.msra.mxu0 0.0
        %914 = vmatprep.subr.mxu0 0.0
        %915 = vmatpush1.msra.mxu0 0.0
        %916 = vmatprep.subr.mxu0 0.0
        %917 = vmatpush1.msra.mxu0 0.0
        %918 = vmatprep.subr.mxu0 0.0
        %919 = vmatpush1.msra.mxu0 0.0
        %920 = vmatprep.subr.mxu0 0.0
        %921 = vmatpush1.msra.mxu0 0.0
        %922 = vmatprep.subr.mxu0 0.0
        %923 = vmatpush1.msra.mxu0 0.0
        %924 = vmatprep.subr.mxu0 0.0
        %925 = vmatpush1.msra.mxu0 0.0
        %926 = vmatprep.subr.mxu0 0.0
        %927 = vmatpush1.msra.mxu0 0.0
        %928 = vmatprep.subr.mxu0 0.0
        %929 = vmatpush1.msra.mxu0 0.0
        %930 = vmatprep.subr.mxu0 0.0
        %931 = vmatpush1.msra.mxu0 0.0
        %932 = vmatprep.subr.mxu0 0.0
        %933 = vmatpush1.msra.mxu0 0.0
        %934 = vmatprep.subr.mxu0 0.0
        %935 = vmatpush1.msra.mxu0 0.0
        %936 = vmatprep.subr.mxu0 0.0
        %937 = vmatpush1.msra.mxu0 0.0
        %938 = vmatprep.subr.mxu0 0.0
        %939 = vmatpush1.msra.mxu0 0.0
        %940 = vmatprep.mubr.f32.mxu0 0.0
        %941 = vmatmul.mubr.f32.gmra.mrb[0].mxu0 %v874
        %v942 = vpop.f32.mrb[0].mxu0
        %v943 = vadd.f32 0.0, %v942
        %v944 = vpop.f32.mrb[0].mxu0
        %945 = vdwg.mxu0
        %v946 = vrcp.pop %v869
        %v947 = vmul.f32 %v943, %v946
        %s948 = scalar_lea.vmem [#allocation8], 24
        %v949 = vld [vmem:[%s948] sm:$0xff]
        %950 = vrot.lane.b32.xlu0 %v435, 104
        %v951 = vpop.permute.xlu0 %950
        %952 = vrot.lane.b32.xlu0 %v435, 72
        %v953 = vpop.permute.xlu0 %952
        %v954 = vsel %vm443, %v951, 0
        %v956 = vsel %vm443, %v953, 0
        %958 = vmatprep.subr.mxu0 0.0
        %959 = vmatpush1.xpose.msra.mxu0 %v956
        %960 = vmatprep.subr.mxu0 0.0
        %961 = vmatpush1.xpose.msra.mxu0 0.0
        %962 = vmatprep.subr.mxu0 0.0
        %963 = vmatpush1.xpose.msra.mxu0 0.0
        %964 = vmatprep.subr.mxu0 0.0
        %965 = vmatpush1.xpose.msra.mxu0 0.0
        %966 = vmatprep.subr.mxu0 0.0
        %967 = vmatpush1.xpose.msra.mxu0 0.0
        %968 = vmatprep.subr.mxu0 0.0
        %969 = vmatpush1.xpose.msra.mxu0 0.0
        %970 = vmatprep.subr.mxu0 0.0
        %971 = vmatpush1.xpose.msra.mxu0 0.0
        %972 = vmatprep.subr.mxu0 0.0
        %973 = vmatpush1.xpose.msra.mxu0 0.0
        %974 = vmatprep.subr.mxu0 0.0
        %975 = vmatpush1.xpose.msra.mxu0 0.0
        %976 = vmatprep.subr.mxu0 0.0
        %977 = vmatpush1.xpose.msra.mxu0 0.0
        %978 = vmatprep.subr.mxu0 0.0
        %979 = vmatpush1.xpose.msra.mxu0 0.0
        %980 = vmatprep.subr.mxu0 0.0
        %981 = vmatpush1.xpose.msra.mxu0 0.0
        %982 = vmatprep.subr.mxu0 0.0
        %983 = vmatpush1.xpose.msra.mxu0 0.0
        %984 = vmatprep.subr.mxu0 0.0
        %985 = vmatpush1.xpose.msra.mxu0 0.0
        %986 = vmatprep.subr.mxu0 0.0
        %987 = vmatpush1.xpose.msra.mxu0 0.0
        %988 = vmatprep.subr.mxu0 0.0
        %989 = vmatpush1.xpose.msra.mxu0 0.0
        %990 = vmatprep.subr.mxu0 0.0
        %991 = vmatpush1.xpose.msra.mxu0 0.0
        %992 = vmatprep.subr.mxu0 0.0
        %993 = vmatpush1.xpose.msra.mxu0 0.0
        %994 = vmatprep.subr.mxu0 0.0
        %995 = vmatpush1.xpose.msra.mxu0 0.0
        %996 = vmatprep.subr.mxu0 0.0
        %997 = vmatpush1.xpose.msra.mxu0 0.0
        %998 = vmatprep.subr.mxu0 0.0
        %999 = vmatpush1.xpose.msra.mxu0 0.0
        %1000 = vmatprep.subr.mxu0 0.0
        %1001 = vmatpush1.xpose.msra.mxu0 0.0
        %1002 = vmatprep.subr.mxu0 0.0
        %1003 = vmatpush1.xpose.msra.mxu0 0.0
        %1004 = vmatprep.subr.mxu0 0.0
        %1005 = vmatpush1.xpose.msra.mxu0 0.0
        %1006 = vmatprep.subr.mxu0 0.0
        %1007 = vmatpush1.xpose.msra.mxu0 0.0
        %1008 = vmatprep.subr.mxu0 0.0
        %1009 = vmatpush1.xpose.msra.mxu0 0.0
        %1010 = vmatprep.subr.mxu0 0.0
        %1011 = vmatpush1.xpose.msra.mxu0 0.0
        %1012 = vmatprep.subr.mxu0 0.0
        %1013 = vmatpush1.xpose.msra.mxu0 0.0
        %1014 = vmatprep.subr.mxu0 0.0
        %1015 = vmatpush1.xpose.msra.mxu0 0.0
        %1016 = vmatprep.subr.mxu0 0.0
        %1017 = vmatpush1.xpose.msra.mxu0 0.0
        %1018 = vmatprep.subr.mxu0 0.0
        %1019 = vmatpush1.xpose.msra.mxu0 0.0
        %1020 = vmatprep.subr.mxu0 0.0
        %1021 = vmatpush1.xpose.msra.mxu0 0.0
        %1022 = vmatprep.mubr.f32.mxu0 0.0
        %1023 = vmatmul.mubr.f32.gmra.mrb[0].mxu0 %v954
        %v1024 = vpop.f32.mrb[0].mxu0
        %v1025 = vadd.f32 %v949, %v1024
        %v1026 = vpop.f32.mrb[0].mxu0
        %1027 = vdwg.mxu0
        %v1028 = vadd.f32 %v1025, %v522
        %v1029 = vsel %vm443, %v1028, -inf
        %1030 = vmax.xlane.f32.xlu0 %v1029
        %v1031 = vpop.xlane.xlu0 %1030
        %v1032 = vsub.f32 %v1028, %v1031
        %v1033 = vmul.f32 %v1032, 1.442695
        %v1034 = vpow.pop %v1033
        %v1035 = vsel %vm443, %v1034, 0.0
        %1036 = vadd.xlane.f32.xlu0 %v1035
        %v1037 = vpop.xlane.xlu0 %1036
        %1038 = vrot.lane.b32.xlu0 %v435, 40
        %v1039 = vpop.permute.xlu0 %1038
        %v1042 = vsel %vm443, %v1034, 0
        %1044 = vmatprep.subr.mxu0 0.0
        %1045 = vmatpush1.msra.mxu0 %v1039
        %1046 = vmatprep.subr.mxu0 0.0
        %1047 = vmatpush1.msra.mxu0 0.0
        %1048 = vmatprep.subr.mxu0 0.0
        %1049 = vmatpush1.msra.mxu0 0.0
        %1050 = vmatprep.subr.mxu0 0.0
        %1051 = vmatpush1.msra.mxu0 0.0
        %1052 = vmatprep.subr.mxu0 0.0
        %1053 = vmatpush1.msra.mxu0 0.0
        %1054 = vmatprep.subr.mxu0 0.0
        %1055 = vmatpush1.msra.mxu0 0.0
        %1056 = vmatprep.subr.mxu0 0.0
        %1057 = vmatpush1.msra.mxu0 0.0
        %1058 = vmatprep.subr.mxu0 0.0
        %1059 = vmatpush1.msra.mxu0 0.0
        %1060 = vmatprep.subr.mxu0 0.0
        %1061 = vmatpush1.msra.mxu0 0.0
        %1062 = vmatprep.subr.mxu0 0.0
        %1063 = vmatpush1.msra.mxu0 0.0
        %1064 = vmatprep.subr.mxu0 0.0
        %1065 = vmatpush1.msra.mxu0 0.0
        %1066 = vmatprep.subr.mxu0 0.0
        %1067 = vmatpush1.msra.mxu0 0.0
        %1068 = vmatprep.subr.mxu0 0.0
        %1069 = vmatpush1.msra.mxu0 0.0
        %1070 = vmatprep.subr.mxu0 0.0
        %1071 = vmatpush1.msra.mxu0 0.0
        %1072 = vmatprep.subr.mxu0 0.0
        %1073 = vmatpush1.msra.mxu0 0.0
        %1074 = vmatprep.subr.mxu0 0.0
        %1075 = vmatpush1.msra.mxu0 0.0
        %1076 = vmatprep.subr.mxu0 0.0
        %1077 = vmatpush1.msra.mxu0 0.0
        %1078 = vmatprep.subr.mxu0 0.0
        %1079 = vmatpush1.msra.mxu0 0.0
        %1080 = vmatprep.subr.mxu0 0.0
        %1081 = vmatpush1.msra.mxu0 0.0
        %1082 = vmatprep.subr.mxu0 0.0
        %1083 = vmatpush1.msra.mxu0 0.0
        %1084 = vmatprep.subr.mxu0 0.0
        %1085 = vmatpush1.msra.mxu0 0.0
        %1086 = vmatprep.subr.mxu0 0.0
        %1087 = vmatpush1.msra.mxu0 0.0
        %1088 = vmatprep.subr.mxu0 0.0
        %1089 = vmatpush1.msra.mxu0 0.0
        %1090 = vmatprep.subr.mxu0 0.0
        %1091 = vmatpush1.msra.mxu0 0.0
        %1092 = vmatprep.subr.mxu0 0.0
        %1093 = vmatpush1.msra.mxu0 0.0
        %1094 = vmatprep.subr.mxu0 0.0
        %1095 = vmatpush1.msra.mxu0 0.0
        %1096 = vmatprep.subr.mxu0 0.0
        %1097 = vmatpush1.msra.mxu0 0.0
        %1098 = vmatprep.subr.mxu0 0.0
        %1099 = vmatpush1.msra.mxu0 0.0
        %1100 = vmatprep.subr.mxu0 0.0
        %1101 = vmatpush1.msra.mxu0 0.0
        %1102 = vmatprep.subr.mxu0 0.0
        %1103 = vmatpush1.msra.mxu0 0.0
        %1104 = vmatprep.subr.mxu0 0.0
        %1105 = vmatpush1.msra.mxu0 0.0
        %1106 = vmatprep.subr.mxu0 0.0
        %1107 = vmatpush1.msra.mxu0 0.0
        %1108 = vmatprep.mubr.f32.mxu0 0.0
        %1109 = vmatmul.mubr.f32.gmra.mrb[0].mxu0 %v1042
        %v1110 = vpop.f32.mrb[0].mxu0
        %v1111 = vadd.f32 0.0, %v1110
        %v1112 = vpop.f32.mrb[0].mxu0
        %1113 = vdwg.mxu0
        %v1114 = vrcp.pop %v1037
        %v1115 = vmul.f32 %v1111, %v1114
        %1117 = vrot.lane.b32.xlu0 %v779, 8
        %v1118 = vpop.permute.xlu0 %1117
        %1121 = vrot.lane.b32.xlu0 %v947, 16
        %v1122 = vpop.permute.xlu0 %1121
        %1125 = vrot.lane.b32.xlu0 %v1115, 24
        %v1126 = vpop.permute.xlu0 %1125
        %v1128 = vsel %vm443, %v611, %v1118
        %vm1129 = vcmask 130048
        %v1130 = vsel %vm1129, %v1128, %v1122
        %vm1131 = vcmask 195584
        %v1132 = vsel %vm1131, %v1130, %v1126
        %v1133 = vld [vmem:[#allocation7] sm:$0xff]
        %v1134 = vld [vmem:[#allocation7 + $0x8] sm:$0xff]
        %v1135 = vld [vmem:[#allocation7 + $0x10] sm:$0xff]
        %v1136 = vld [vmem:[#allocation7 + $0x18] sm:$0xff]
        %v1137 = vld [vmem:[%s4] sm:$0x1]
        %v1139 = vlaneseq
        %v1140 = vshrl.u32 %v1139, 7
        %v1141 = vsub.s32 0, %v1140
        %v1142 = vrot.slane %v1137, %v1141
        %v1145 = vsel %vm364, %v1132, 0
        %1147 = vmatprep.subr.mxu0 0.0
        %1148 = vmatpush1.msra.mxu0 %v1133
        %1149 = vmatprep.subr.mxu0 0.0
        %1150 = vmatpush1.msra.mxu0 %v1134
        %1151 = vmatprep.subr.mxu0 0.0
        %1152 = vmatpush1.msra.mxu0 %v1135
        %1153 = vmatprep.subr.mxu0 0.0
        %1154 = vmatpush1.msra.mxu0 %v1136
        %1155 = vmatprep.subr.mxu0 0.0
        %1156 = vmatpush1.msra.mxu0 0.0
        %1157 = vmatprep.subr.mxu0 0.0
        %1158 = vmatpush1.msra.mxu0 0.0
        %1159 = vmatprep.subr.mxu0 0.0
        %1160 = vmatpush1.msra.mxu0 0.0
        %1161 = vmatprep.subr.mxu0 0.0
        %1162 = vmatpush1.msra.mxu0 0.0
        %1163 = vmatprep.subr.mxu0 0.0
        %1164 = vmatpush1.msra.mxu0 0.0
        %1165 = vmatprep.subr.mxu0 0.0
        %1166 = vmatpush1.msra.mxu0 0.0
        %1167 = vmatprep.subr.mxu0 0.0
        %1168 = vmatpush1.msra.mxu0 0.0
        %1169 = vmatprep.subr.mxu0 0.0
        %1170 = vmatpush1.msra.mxu0 0.0
        %1171 = vmatprep.subr.mxu0 0.0
        %1172 = vmatpush1.msra.mxu0 0.0
        %1173 = vmatprep.subr.mxu0 0.0
        %1174 = vmatpush1.msra.mxu0 0.0
        %1175 = vmatprep.subr.mxu0 0.0
        %1176 = vmatpush1.msra.mxu0 0.0
        %1177 = vmatprep.subr.mxu0 0.0
        %1178 = vmatpush1.msra.mxu0 0.0
        %1179 = vmatprep.subr.mxu0 0.0
        %1180 = vmatpush1.msra.mxu0 0.0
        %1181 = vmatprep.subr.mxu0 0.0
        %1182 = vmatpush1.msra.mxu0 0.0
        %1183 = vmatprep.subr.mxu0 0.0
        %1184 = vmatpush1.msra.mxu0 0.0
        %1185 = vmatprep.subr.mxu0 0.0
        %1186 = vmatpush1.msra.mxu0 0.0
        %1187 = vmatprep.subr.mxu0 0.0
        %1188 = vmatpush1.msra.mxu0 0.0
        %1189 = vmatprep.subr.mxu0 0.0
        %1190 = vmatpush1.msra.mxu0 0.0
        %1191 = vmatprep.subr.mxu0 0.0
        %1192 = vmatpush1.msra.mxu0 0.0
        %1193 = vmatprep.subr.mxu0 0.0
        %1194 = vmatpush1.msra.mxu0 0.0
        %1195 = vmatprep.subr.mxu0 0.0
        %1196 = vmatpush1.msra.mxu0 0.0
        %1197 = vmatprep.subr.mxu0 0.0
        %1198 = vmatpush1.msra.mxu0 0.0
        %1199 = vmatprep.subr.mxu0 0.0
        %1200 = vmatpush1.msra.mxu0 0.0
        %1201 = vmatprep.subr.mxu0 0.0
        %1202 = vmatpush1.msra.mxu0 0.0
        %1203 = vmatprep.subr.mxu0 0.0
        %1204 = vmatpush1.msra.mxu0 0.0
        %1205 = vmatprep.subr.mxu0 0.0
        %1206 = vmatpush1.msra.mxu0 0.0
        %1207 = vmatprep.subr.mxu0 0.0
        %1208 = vmatpush1.msra.mxu0 0.0
        %1209 = vmatprep.subr.mxu0 0.0
        %1210 = vmatpush1.msra.mxu0 0.0
        %1211 = vmatprep.mubr.f32.mxu0 0.0
        %1212 = vmatmul.mubr.f32.gmra.mrb[0].mxu0 %v1145
        %v1213 = vpop.f32.mrb[0].mxu0
        %v1214 = vadd.f32 %v1142, %v1213
        %v1215 = vpop.f32.mrb[0].mxu0
        %1216 = vdwg.mxu0
        %1217 = vst.msk [vmem:[%s348] sm:$0xff] %vm364, %v1214
        %s1218 = sand.u32 %s191, 1
        %s1219 = scalar_lea.sflag [#allocation4], %s1218
        %s1220 = sand.u32 %s191, 1
        %s1221 = smul.addr %s1220, 8
        %s1222 = scalar_lea.vmem [#allocation10], %s1221
        // Predicated region
        $region65: #{tpu_custom_call.1} parent=47 // pred_check
          %p1223 = pneg %p201
        $region66: #{tpu_custom_call.1} parent=47 // pred_check_branch
          %1225 = sbr.rel (%p1223) target = $region68
        $region67: #{tpu_custom_call.1} parent=47 // pred_region
          %s1227 = ssub.s32 128, 128
          %1228 = vsyncadd %s1219, %s1227
          %s1229 = smul.addr %s26, 128
          %s1230 = scalar_lea.hbm %s7, %s1229
          %s1232 = sshll.u32 %s1222, 4
          %s1233 = int_to_ptr.vmem [resolvable:$true] %s1232
          %1235 = dma.vmem_to_hbm [thread:$0]  %s1233, 128, %s1230, %s1219
        $region68: #{tpu_custom_call.1} parent=47 // pred_fallthru
          _
      $region48: #{tpu_custom_call.1} parent=5 // pred_fallthru
        _
      %p1236 = scmp.le.s32.totalorder 2, %s21
      // Predicated region
      $region69: #{tpu_custom_call.1} parent=5 // pred_check
        %p1237 = pneg %p1236
      $region70: #{tpu_custom_call.1} parent=5 // pred_check_branch
        %1239 = sbr.rel (%p1237) target = $region72
      $region71: #{tpu_custom_call.1} parent=5 // pred_region
        %s1240 = ssub.s32 %s21, 2
        // Predicated region
        $region73: #{tpu_custom_call.1} parent=71 // pred_check
          %p1241 = pneg %p207
        $region74: #{tpu_custom_call.1} parent=71 // pred_check_branch
          %1243 = sbr.rel (%p1241) target = $region76
        $region75: #{tpu_custom_call.1} parent=71 // pred_region
          %s1244 = sand.u32 %s192, 1
          %s1245 = scalar_lea.sflag [#allocation4], %s1244
          %s1246 = sand.u32 %s192, 1
          %s1247 = smul.addr %s1246, 8
          %s1248 = scalar_lea.vmem [#allocation10], %s1247
          %1249 = dma.done %s1245, 128
        $region76: #{tpu_custom_call.1} parent=71 // pred_fallthru
          _
      $region72: #{tpu_custom_call.1} parent=5 // pred_fallthru
        _
    $region6: #{tpu_custom_call.1} parent=1 // loop_footer
      %s25 = sadd.s32 1, %s21
    $region7: #{tpu_custom_call.1} parent=1 // loop_footer_branch
      %20 = sbr.rel target = $region3
    $region8: #{tpu_custom_call.1} parent=1 // loop_exit
      _
    %1250 = vsyncpa [#allocation3], 1
    %s1251 = scalar_lea.sflag [#allocation3], 1
    %1252 = vsyncpa %s1251, 1
    %1253 = vsyncpa [#allocation6], 1
    %1254 = vsyncpa [#allocation9], 1
    %1255 = vsyncpa [#allocation4], 1
    %s1256 = scalar_lea.sflag [#allocation4], 1
    %1257 = vsyncpa %s1256, 1

</llo_original>
